<compile_context>
chip_gen: v5e
topology: v5e:2x2
jax: 0.10.0
libtpu: 0.0.40
codegen_flags: <defaults>
</compile_context>

<pallas_src>
import functools

import jax
import jax.numpy as jnp
from jax.experimental import pallas as pl
from jax.experimental.pallas import tpu as pltpu


def _hcgnn_kernel(negative_slope, num_heads,
                  counts_ref, code_ref, mess_ref, el_ref, er_ref, out_ref):
    """grid = (dst_tiles, num_etypes); one step = (dst tile d, etype t)."""
    d = pl.program_id(0)
    t = pl.program_id(1)

    @pl.when(t == 0)
    def _init():
        out_ref[...] = jnp.zeros_like(out_ref)

    # Skip (dst tile, etype) steps with no edge of this type: their whole
    # softmax + matmul contribution is exactly zero (eon mask ⊆ adj mask).
    @pl.when(counts_ref[d, t] > 0)
    def _body():
        # int8 code in HBM/VMEM (4x less traffic); widen once for the compares.
        code = code_ref[...].astype(jnp.int32)     # [TD, N]; 0=no edge, k+1=etype k
        adj_b = code != 0                          # softmax support (all etypes)
        eon_b = code == (t + 1)                    # edges whose own type is t

        mess = mess_ref[t]                         # [N, C]   bf16 (MXU operand)
        el = el_ref[t]                             # [H, N]   f32 src-side logits
        er = er_ref[0]                             # [TD, H]  f32 dst-side logits

        td, ns = code.shape
        neg_big = jnp.float32(-1e30)

        # Per-head 2-D softmax over incoming edges (src on the lane axis).
        alpha_sum = jnp.zeros((td, ns), jnp.float32)
        for h in range(num_heads):                 # H is tiny -> static unroll
            s = er[:, h:h + 1] + el[h:h + 1, :]    # u_add_v             [TD, N]
            s = jnp.maximum(s, negative_slope * s) # LeakyReLU (slope < 1)
            s = jnp.where(adj_b, s, neg_big)       # restrict to real edges
            m = jnp.max(s, axis=1, keepdims=True)  # [TD, 1]
            p = jnp.exp(s - m)                     # non-edges underflow to 0
            denom = jnp.sum(p, axis=1, keepdims=True)
            inv = pl.reciprocal(jnp.maximum(denom, jnp.float32(1e-30)), approx=True)
            alpha_sum = alpha_sum + p * inv        # attn_drop: identity (eval)

        # Post-softmax mask by the edge's own etype (hoisted out of the head
        # loop -- mathematically identical), then u_mul_e + sum on the MXU.
        alpha = jnp.where(eon_b, alpha_sum, 0.0).astype(jnp.bfloat16)
        out_ref[...] += jnp.dot(alpha, mess, preferred_element_type=jnp.float32)

    @pl.when(t == pl.num_programs(1) - 1)
    def _finalize():
        r = out_ref[...]
        out_ref[...] = jnp.where(r > 0, r, jnp.exp(r) - 1.0)   # ELU activation


def hcgnn_conv(feat, com_signal, adj, etype, node_collector,
               multi_linear, attn_l, attn_r, *,
               negative_slope=0.2, block_d=None):
    N, I = feat.shape
    T, _, C = multi_linear.shape
    H = attn_l.shape[1]

    # Generation-aware VMEM budget (v7x: 64 MiB/TC vs 128 MiB on v5e/v6e).
    try:
        vmem_cap = int(pltpu.get_tpu_info().vmem_capacity_bytes)
    except Exception:
        vmem_cap = 128 * 1024 * 1024
    small_vmem = vmem_cap < 96 * 1024 * 1024

    if block_d is None:
        cap = 256 if small_vmem else 512
        block_d = N if N <= cap else cap
    assert N % block_d == 0, "dst tile must divide N"
    assert block_d == N or block_d % 32 == 0, \
        "dst tile must be a multiple of 32 (int8 edge-code sublane tiling)"

    # ---- Host-side (plain XLA) precompute of the tiny, badly-shaped matmuls ----
    coll = node_collector.astype(jnp.float32)[:, :, None]          # [T, N, 1]
    fm = feat[None].astype(jnp.float32) * coll                     # feature_multi_modal
    proc = jnp.einsum('tni,tic->tnc', fm, multi_linear) * coll
    mess_f32 = (proc + com_signal[None]).astype(jnp.float32)       # [T, N, C]
    el = jnp.einsum('tnc,thc->thn', mess_f32, attn_l).astype(jnp.float32)  # [T, H, N]
    er = jnp.einsum('tnc,thc->tnh', mess_f32, attn_r).astype(jnp.float32)  # [T, N, H]
    mess = mess_f32.astype(jnp.bfloat16)   # MXU operand only; accumulation stays f32

    # Compact int8 edge-code matrix: 0 = no edge, k+1 = edge with etype k.
    code = jnp.where(adj > 0, etype.astype(jnp.int32) + 1, 0).astype(jnp.int8)

    # Per-(dst tile, etype) edge counts -> skip empty grid steps in-kernel.
    n_dst_tiles = N // block_d
    code_tiles = code.reshape(n_dst_tiles, block_d, N)
    tvals = jnp.arange(1, T + 1, dtype=jnp.int8)
    counts = jnp.sum(code_tiles[:, None, :, :] == tvals[None, :, None, None],
                     axis=(2, 3)).astype(jnp.int32)                # [tiles, T]

    kern = functools.partial(_hcgnn_kernel, float(negative_slope), int(H))
    vmem_limit = min(48 * 1024 * 1024, vmem_cap // 2)

    return pl.pallas_call(
        kern,
        out_shape=jax.ShapeDtypeStruct((N, C), jnp.float32),
        grid_spec=pltpu.PrefetchScalarGridSpec(
            num_scalar_prefetch=1,                 # counts -> SMEM
            grid=(n_dst_tiles, T),
            in_specs=[
                # int8 edge code: one dst-tile slab, reused across all T steps.
                pl.BlockSpec((block_d, N), lambda d, t, cnt: (d, 0)),
                # mess / el: whole-array VMEM resident (grid-invariant block,
                # single DMA total); indexed with [t] inside the kernel.
                pl.BlockSpec((T, N, C), lambda d, t, cnt: (0, 0, 0)),
                pl.BlockSpec((T, H, N), lambda d, t, cnt: (0, 0, 0)),
                # er: tiny per-(t, d) tile.
                pl.BlockSpec((1, block_d, H), lambda d, t, cnt: (t, d, 0)),
            ],
            out_specs=pl.BlockSpec((block_d, C), lambda d, t, cnt: (d, 0)),
        ),
        compiler_params=pltpu.CompilerParams(
            dimension_semantics=("parallel", "arbitrary"),
            vmem_limit_bytes=int(vmem_limit)),
    )(counts, code, mess, el, er)


def hcgnn_reference(feat, com_signal, adj, eon, node_collector,
                    multi_linear, attn_l, attn_r, negative_slope=0.2):
    """Pure-JAX dense reformulation of the DGL forward (for verification)."""
    coll = node_collector[:, :, None]                          # [T, N, 1]
    fm = feat[None] * coll                                     # [T, N, I]
    proc = jnp.einsum('tni,tic->tnc', fm, multi_linear) * coll
    mess = proc + com_signal[None]                             # [T, N, C]
    el = jnp.einsum('tnc,thc->tnh', mess, attn_l)
    er = jnp.einsum('tnc,thc->tnh', mess, attn_r)
    sc = er[:, :, None, :] + el[:, None, :, :]                 # [T, Nd, Ns, H]
    sc = jnp.where(sc >= 0, sc, negative_slope * sc)
    sc = jnp.where(adj[None, :, :, None] > 0, sc, -1e30)
    p = jnp.exp(sc - sc.max(axis=2, keepdims=True)) * adj[None, :, :, None]
    alpha = p / p.sum(axis=2, keepdims=True)
    alpha = alpha * eon[:, :, :, None]
    out = jnp.einsum('tdsh,tsc->dc', alpha, mess)
    return jnp.where(out > 0, out, jnp.exp(out) - 1.0)         # ELU


if __name__ == "__main__":
    # Small shapes consistent with the module.
    N, I, C, H, T = 256, 8, 32, 4, 3          # nodes, in_dim, com_dim, heads, etypes
    negative_slope = 0.2

    key = jax.random.PRNGKey(0)
    k1, k2, k3, k4, k5, k6, k7 = jax.random.split(key, 7)

    feat = jax.random.normal(k1, (N, I), jnp.float32)
    com_signal = jax.random.normal(k2, (N, C), jnp.float32)

    # Random graph with self-loops (guarantees no 0-in-degree nodes).
    adj = (jax.random.uniform(k3, (N, N)) < 0.1).astype(jnp.float32)
    adj = jnp.maximum(adj, jnp.eye(N, dtype=jnp.float32))       # adj[dst, src]
    etype = jax.random.randint(k4, (N, N), 0, T)                # per-edge type
    eon = (jax.nn.one_hot(etype, T, axis=0) * adj[None]).astype(jnp.float32)  # [T,Nd,Ns]

    # node_etype_collector[t, n] = 1 if node n touches an edge of type t.
    node_collector = ((eon.sum(axis=2) > 0) | (eon.sum(axis=1) > 0)).astype(jnp.float32)

    # Parameters (deterministic synthetic init).
    # multi_linear: xavier_normal_ with gain=calculate_gain('relu')=sqrt(2).
    gain = jnp.sqrt(2.0)
    fan_in, fan_out = I * C, T * C
    std = gain * jnp.sqrt(2.0 / (fan_in + fan_out))
    multi_linear = std * jax.random.normal(k5, (T, I, C), jnp.float32)
    # attn_l / attn_r are left uninitialized in the PyTorch module; use a
    # deterministic small normal init here (singleton node dim squeezed).
    attn_l = 0.1 * jax.random.normal(k6, (T, H, C), jnp.float32)
    attn_r = 0.1 * jax.random.normal(k7, (T, H, C), jnp.float32)
    # TODO(synk): self.fc / self.bias are dead parameters in forward(); omitted.

    out = hcgnn_conv(feat, com_signal, adj, etype, node_collector,
                     multi_linear, attn_l, attn_r,
                     negative_slope=negative_slope, block_d=128)
    out = jax.block_until_ready(out)

    ref = hcgnn_reference(feat, com_signal, adj, eon, node_collector,
                          multi_linear, attn_l, attn_r, negative_slope)
    assert out.shape == (N, C) and out.dtype == jnp.float32
    # Tolerance covers bf16 MXU operands and the approximate (EUP) softmax
    # reciprocal; real bugs produce O(1) errors.
    assert jnp.allclose(out, ref, rtol=2e-2, atol=2e-2), \
        f"max abs err {jnp.max(jnp.abs(out - ref))}"

    print("KERNEL_OK")
</pallas_src>

<mosaic_0001>
module attributes {stable_mosaic.version = 11 : i64} {
  func.func @_hcgnn_kernel(%arg0: i32, %arg1: i32, %arg2: memref<2x3xi32, #tpu.memory_space<smem>>, %arg3: memref<128x256xi8, #tpu.memory_space<vmem>>, %arg4: memref<3x256x32xbf16, #tpu.memory_space<vmem>>, %arg5: memref<3x4x256xf32, #tpu.memory_space<vmem>>, %arg6: memref<1x128x4xf32, #tpu.memory_space<vmem>>, %arg7: memref<128x32xf32, #tpu.memory_space<vmem>>) attributes {dimension_semantics = [#tpu.dimension_semantics<parallel>, #tpu.dimension_semantics<arbitrary>], iteration_bounds = array<i64: 2, 3>, scalar_prefetch = 1 : i64, scratch_operands = 0 : i64, tpu.core_type = #tpu.core_type<tc>, window_params = [{transform_indices = @transform_0, window_bounds = array<i64: 128, 256>}, {pipeline_mode = #tpu.pipeline_mode<synchronous>, transform_indices = @transform_1, window_bounds = array<i64: 3, 256, 32>}, {pipeline_mode = #tpu.pipeline_mode<synchronous>, transform_indices = @transform_2, window_bounds = array<i64: 3, 4, 256>}, {transform_indices = @transform_3, window_bounds = array<i64: 1, 128, 4>}, {transform_indices = @transform_4, window_bounds = array<i64: 128, 32>}]} {
    %c0_i32 = arith.constant 0 : i32
    %0 = arith.cmpi eq, %arg1, %c0_i32 : i32
    %1 = arith.extui %0 : i1 to i32
    %c0_i32_0 = arith.constant 0 : i32
    %2 = arith.cmpi ne, %1, %c0_i32_0 : i32
    scf.if %2 {
      %cst = arith.constant 0.000000e+00 : f32
      %12 = vector.broadcast %cst : f32 to vector<128x32xf32>
      %c0 = arith.constant 0 : index
      %c0_4 = arith.constant 0 : index
      %13 = vector.load %arg7[%c0, %c0_4] : memref<128x32xf32, #tpu.memory_space<vmem>>, vector<128x32xf32>
      tpu.vector_store %arg7[%c0, %c0_4], %12 {strides = array<i32>} : memref<128x32xf32, #tpu.memory_space<vmem>>, vector<128x32xf32>,
    } else {
    }
    %3 = arith.index_cast %arg0 : i32 to index
    %4 = arith.index_cast %arg1 : i32 to index
    %5 = memref.load %arg2[%3, %4] : memref<2x3xi32, #tpu.memory_space<smem>>
    %c0_i32_1 = arith.constant 0 : i32
    %6 = arith.cmpi sgt, %5, %c0_i32_1 : i32
    %7 = arith.extui %6 : i1 to i32
    %c0_i32_2 = arith.constant 0 : i32
    %8 = arith.cmpi ne, %7, %c0_i32_2 : i32
    scf.if %8 {
      %c0 = arith.constant 0 : index
      %c0_4 = arith.constant 0 : index
      %12 = vector.load %arg3[%c0, %c0_4] : memref<128x256xi8, #tpu.memory_space<vmem>>, vector<128x256xi8>
      %13 = arith.extsi %12 : vector<128x256xi8> to vector<128x256xi32>
      %c0_i32_5 = arith.constant 0 : i32
      %14 = vector.broadcast %c0_i32_5 : i32 to vector<128x256xi32>
      %15 = arith.cmpi ne, %13, %14 : vector<128x256xi32>
      %c1_i32 = arith.constant 1 : i32
      %16 = arith.addi %arg1, %c1_i32 : i32
      %17 = vector.broadcast %16 : i32 to vector<128x256xi32>
      %18 = arith.cmpi eq, %13, %17 : vector<128x256xi32>
      %19 = arith.index_cast %arg1 : i32 to index
      %c0_6 = arith.constant 0 : index
      %c0_7 = arith.constant 0 : index
      %20 = vector.load %arg4[%19, %c0_6, %c0_7] : memref<3x256x32xbf16, #tpu.memory_space<vmem>>, vector<1x256x32xbf16>
      %21 = vector.shape_cast %20 : vector<1x256x32xbf16> to vector<256x32xbf16>
      %22 = arith.index_cast %arg1 : i32 to index
      %c0_8 = arith.constant 0 : index
      %c0_9 = arith.constant 0 : index
      %23 = vector.load %arg5[%22, %c0_8, %c0_9] : memref<3x4x256xf32, #tpu.memory_space<vmem>>, vector<1x4x256xf32>
      %24 = vector.shape_cast %23 : vector<1x4x256xf32> to vector<4x256xf32>
      %c0_10 = arith.constant 0 : index
      %c0_11 = arith.constant 0 : index
      %c0_12 = arith.constant 0 : index
      %25 = vector.load %arg6[%c0_10, %c0_11, %c0_12] : memref<1x128x4xf32, #tpu.memory_space<vmem>>, vector<1x128x4xf32>
      %26 = vector.shape_cast %25 : vector<1x128x4xf32> to vector<128x4xf32>
      %cst = arith.constant 0.000000e+00 : f32
      %27 = vector.broadcast %cst : f32 to vector<128x256xf32>
      %28 = vector.extract_strided_slice %26 {offsets = [0, 0], sizes = [128, 1], strides = [1, 1]} : vector<128x4xf32> to vector<128x1xf32>
      %29 = vector.extract_strided_slice %24 {offsets = [0, 0], sizes = [1, 256], strides = [1, 1]} : vector<4x256xf32> to vector<1x256xf32>
      %30 = vector.broadcast %28 : vector<128x1xf32> to vector<128x256xf32>
      %31 = vector.broadcast %29 : vector<1x256xf32> to vector<128x256xf32>
      %32 = arith.addf %30, %31 : vector<128x256xf32>
      %cst_13 = arith.constant 2.000000e-01 : f32
      %33 = vector.broadcast %cst_13 : f32 to vector<128x256xf32>
      %34 = arith.mulf %33, %32 : vector<128x256xf32>
      %35 = arith.maximumf %32, %34 : vector<128x256xf32>
      %cst_14 = arith.constant -1.000000e+30 : f32
      %36 = vector.broadcast %cst_14 : f32 to vector<128x256xf32>
      %37 = arith.select %15, %35, %36 : vector<128x256xi1>, vector<128x256xf32>
      %cst_15 = arith.constant dense<0xFF800000> : vector<128xf32>
      %38 = vector.multi_reduction <maximumf>, %37, %cst_15 [1] : vector<128x256xf32> to vector<128xf32>
      %39 = vector.shape_cast %38 : vector<128xf32> to vector<128x1xf32>
      %40 = vector.broadcast %39 : vector<128x1xf32> to vector<128x256xf32>
      %41 = arith.subf %37, %40 : vector<128x256xf32>
      %42 = math.exp %41 : vector<128x256xf32>
      %cst_16 = arith.constant dense<0.000000e+00> : vector<128xf32>
      %43 = vector.multi_reduction <add>, %42, %cst_16 [1] : vector<128x256xf32> to vector<128xf32>
      %44 = vector.shape_cast %43 : vector<128xf32> to vector<128x1xf32>
      %cst_17 = arith.constant 1.000000e-30 : f32
      %45 = vector.broadcast %cst_17 : f32 to vector<128x1xf32>
      %46 = arith.maximumf %44, %45 : vector<128x1xf32>
      %47 = tpu.reciprocal %46 {approx = true} : vector<128x1xf32> -> vector<128x1xf32>
      %48 = vector.broadcast %47 : vector<128x1xf32> to vector<128x256xf32>
      %49 = arith.mulf %42, %48 : vector<128x256xf32>
      %50 = arith.addf %27, %49 : vector<128x256xf32>
      %51 = vector.extract_strided_slice %26 {offsets = [0, 1], sizes = [128, 1], strides = [1, 1]} : vector<128x4xf32> to vector<128x1xf32>
      %52 = vector.extract_strided_slice %24 {offsets = [1, 0], sizes = [1, 256], strides = [1, 1]} : vector<4x256xf32> to vector<1x256xf32>
      %53 = vector.broadcast %51 : vector<128x1xf32> to vector<128x256xf32>
      %54 = vector.broadcast %52 : vector<1x256xf32> to vector<128x256xf32>
      %55 = arith.addf %53, %54 : vector<128x256xf32>
      %cst_18 = arith.constant 2.000000e-01 : f32
      %56 = vector.broadcast %cst_18 : f32 to vector<128x256xf32>
      %57 = arith.mulf %56, %55 : vector<128x256xf32>
      %58 = arith.maximumf %55, %57 : vector<128x256xf32>
      %cst_19 = arith.constant -1.000000e+30 : f32
      %59 = vector.broadcast %cst_19 : f32 to vector<128x256xf32>
      %60 = arith.select %15, %58, %59 : vector<128x256xi1>, vector<128x256xf32>
      %cst_20 = arith.constant dense<0xFF800000> : vector<128xf32>
      %61 = vector.multi_reduction <maximumf>, %60, %cst_20 [1] : vector<128x256xf32> to vector<128xf32>
      %62 = vector.shape_cast %61 : vector<128xf32> to vector<128x1xf32>
      %63 = vector.broadcast %62 : vector<128x1xf32> to vector<128x256xf32>
      %64 = arith.subf %60, %63 : vector<128x256xf32>
      %65 = math.exp %64 : vector<128x256xf32>
      %cst_21 = arith.constant dense<0.000000e+00> : vector<128xf32>
      %66 = vector.multi_reduction <add>, %65, %cst_21 [1] : vector<128x256xf32> to vector<128xf32>
      %67 = vector.shape_cast %66 : vector<128xf32> to vector<128x1xf32>
      %cst_22 = arith.constant 1.000000e-30 : f32
      %68 = vector.broadcast %cst_22 : f32 to vector<128x1xf32>
      %69 = arith.maximumf %67, %68 : vector<128x1xf32>
      %70 = tpu.reciprocal %69 {approx = true} : vector<128x1xf32> -> vector<128x1xf32>
      %71 = vector.broadcast %70 : vector<128x1xf32> to vector<128x256xf32>
      %72 = arith.mulf %65, %71 : vector<128x256xf32>
      %73 = arith.addf %50, %72 : vector<128x256xf32>
      %74 = vector.extract_strided_slice %26 {offsets = [0, 2], sizes = [128, 1], strides = [1, 1]} : vector<128x4xf32> to vector<128x1xf32>
      %75 = vector.extract_strided_slice %24 {offsets = [2, 0], sizes = [1, 256], strides = [1, 1]} : vector<4x256xf32> to vector<1x256xf32>
      %76 = vector.broadcast %74 : vector<128x1xf32> to vector<128x256xf32>
      %77 = vector.broadcast %75 : vector<1x256xf32> to vector<128x256xf32>
      %78 = arith.addf %76, %77 : vector<128x256xf32>
      %cst_23 = arith.constant 2.000000e-01 : f32
      %79 = vector.broadcast %cst_23 : f32 to vector<128x256xf32>
      %80 = arith.mulf %79, %78 : vector<128x256xf32>
      %81 = arith.maximumf %78, %80 : vector<128x256xf32>
      %cst_24 = arith.constant -1.000000e+30 : f32
      %82 = vector.broadcast %cst_24 : f32 to vector<128x256xf32>
      %83 = arith.select %15, %81, %82 : vector<128x256xi1>, vector<128x256xf32>
      %cst_25 = arith.constant dense<0xFF800000> : vector<128xf32>
      %84 = vector.multi_reduction <maximumf>, %83, %cst_25 [1] : vector<128x256xf32> to vector<128xf32>
      %85 = vector.shape_cast %84 : vector<128xf32> to vector<128x1xf32>
      %86 = vector.broadcast %85 : vector<128x1xf32> to vector<128x256xf32>
      %87 = arith.subf %83, %86 : vector<128x256xf32>
      %88 = math.exp %87 : vector<128x256xf32>
      %cst_26 = arith.constant dense<0.000000e+00> : vector<128xf32>
      %89 = vector.multi_reduction <add>, %88, %cst_26 [1] : vector<128x256xf32> to vector<128xf32>
      %90 = vector.shape_cast %89 : vector<128xf32> to vector<128x1xf32>
      %cst_27 = arith.constant 1.000000e-30 : f32
      %91 = vector.broadcast %cst_27 : f32 to vector<128x1xf32>
      %92 = arith.maximumf %90, %91 : vector<128x1xf32>
      %93 = tpu.reciprocal %92 {approx = true} : vector<128x1xf32> -> vector<128x1xf32>
      %94 = vector.broadcast %93 : vector<128x1xf32> to vector<128x256xf32>
      %95 = arith.mulf %88, %94 : vector<128x256xf32>
      %96 = arith.addf %73, %95 : vector<128x256xf32>
      %97 = vector.extract_strided_slice %26 {offsets = [0, 3], sizes = [128, 1], strides = [1, 1]} : vector<128x4xf32> to vector<128x1xf32>
      %98 = vector.extract_strided_slice %24 {offsets = [3, 0], sizes = [1, 256], strides = [1, 1]} : vector<4x256xf32> to vector<1x256xf32>
      %99 = vector.broadcast %97 : vector<128x1xf32> to vector<128x256xf32>
      %100 = vector.broadcast %98 : vector<1x256xf32> to vector<128x256xf32>
      %101 = arith.addf %99, %100 : vector<128x256xf32>
      %cst_28 = arith.constant 2.000000e-01 : f32
      %102 = vector.broadcast %cst_28 : f32 to vector<128x256xf32>
      %103 = arith.mulf %102, %101 : vector<128x256xf32>
      %104 = arith.maximumf %101, %103 : vector<128x256xf32>
      %cst_29 = arith.constant -1.000000e+30 : f32
      %105 = vector.broadcast %cst_29 : f32 to vector<128x256xf32>
      %106 = arith.select %15, %104, %105 : vector<128x256xi1>, vector<128x256xf32>
      %cst_30 = arith.constant dense<0xFF800000> : vector<128xf32>
      %107 = vector.multi_reduction <maximumf>, %106, %cst_30 [1] : vector<128x256xf32> to vector<128xf32>
      %108 = vector.shape_cast %107 : vector<128xf32> to vector<128x1xf32>
      %109 = vector.broadcast %108 : vector<128x1xf32> to vector<128x256xf32>
      %110 = arith.subf %106, %109 : vector<128x256xf32>
      %111 = math.exp %110 : vector<128x256xf32>
      %cst_31 = arith.constant dense<0.000000e+00> : vector<128xf32>
      %112 = vector.multi_reduction <add>, %111, %cst_31 [1] : vector<128x256xf32> to vector<128xf32>
      %113 = vector.shape_cast %112 : vector<128xf32> to vector<128x1xf32>
      %cst_32 = arith.constant 1.000000e-30 : f32
      %114 = vector.broadcast %cst_32 : f32 to vector<128x1xf32>
      %115 = arith.maximumf %113, %114 : vector<128x1xf32>
      %116 = tpu.reciprocal %115 {approx = true} : vector<128x1xf32> -> vector<128x1xf32>
      %117 = vector.broadcast %116 : vector<128x1xf32> to vector<128x256xf32>
      %118 = arith.mulf %111, %117 : vector<128x256xf32>
      %119 = arith.addf %96, %118 : vector<128x256xf32>
      %cst_33 = arith.constant 0.000000e+00 : f32
      %120 = vector.broadcast %cst_33 : f32 to vector<128x256xf32>
      %121 = arith.select %18, %119, %120 : vector<128x256xi1>, vector<128x256xf32>
      %122 = arith.truncf %121 : vector<128x256xf32> to vector<128x256xbf16>
      %c0_34 = arith.constant 0 : index
      %c0_35 = arith.constant 0 : index
      %123 = vector.load %arg7[%c0_34, %c0_35] : memref<128x32xf32, #tpu.memory_space<vmem>>, vector<128x32xf32>
      %cst_36 = arith.constant dense<0.000000e+00> : vector<128x32xf32>
      %124 = tpu.matmul %122, %21, %cst_36 {dimension_numbers = #tpu.dot_dimension_numbers<[1], [0], [0], [1], [0, 0, 1, 1], [], []>} : vector<128x256xbf16>, vector<256x32xbf16>, vector<128x32xf32> -> vector<128x32xf32>
      %125 = arith.addf %123, %124 : vector<128x32xf32>
      %c0_37 = arith.constant 0 : index
      %c0_38 = arith.constant 0 : index
      %126 = vector.load %arg7[%c0_37, %c0_38] : memref<128x32xf32, #tpu.memory_space<vmem>>, vector<128x32xf32>
      tpu.vector_store %arg7[%c0_37, %c0_38], %125 {strides = array<i32>} : memref<128x32xf32, #tpu.memory_space<vmem>>, vector<128x32xf32>,
    } else {
    }
    %c2_i32 = arith.constant 2 : i32
    %9 = arith.cmpi eq, %arg1, %c2_i32 : i32
    %10 = arith.extui %9 : i1 to i32
    %c0_i32_3 = arith.constant 0 : i32
    %11 = arith.cmpi ne, %10, %c0_i32_3 : i32
    scf.if %11 {
      %c0 = arith.constant 0 : index
      %c0_4 = arith.constant 0 : index
      %12 = vector.load %arg7[%c0, %c0_4] : memref<128x32xf32, #tpu.memory_space<vmem>>, vector<128x32xf32>
      %cst = arith.constant 0.000000e+00 : f32
      %13 = vector.broadcast %cst : f32 to vector<128x32xf32>
      %14 = arith.cmpf ogt, %12, %13 : vector<128x32xf32>
      %15 = math.exp %12 : vector<128x32xf32>
      %cst_5 = arith.constant 1.000000e+00 : f32
      %16 = vector.broadcast %cst_5 : f32 to vector<128x32xf32>
      %17 = arith.subf %15, %16 : vector<128x32xf32>
      %18 = arith.select %14, %12, %17 : vector<128x32xi1>, vector<128x32xf32>
      %c0_6 = arith.constant 0 : index
      %c0_7 = arith.constant 0 : index
      %19 = vector.load %arg7[%c0_6, %c0_7] : memref<128x32xf32, #tpu.memory_space<vmem>>, vector<128x32xf32>
      tpu.vector_store %arg7[%c0_6, %c0_7], %18 {strides = array<i32>} : memref<128x32xf32, #tpu.memory_space<vmem>>, vector<128x32xf32>,
    } else {
    }
    return
  }
  func.func @transform_0(%arg0: i32, %arg1: i32, %arg2: memref<2x3xi32, #tpu.memory_space<smem>>) -> (i32, i32) {
    %c0_i32 = arith.constant 0 : i32
    %c0_i32_0 = arith.constant 0 : i32
    return %arg0, %c0_i32 : i32, i32
  }
  func.func @transform_1(%arg0: i32, %arg1: i32, %arg2: memref<2x3xi32, #tpu.memory_space<smem>>) -> (i32, i32, i32) {
    %c0_i32 = arith.constant 0 : i32
    %c0_i32_0 = arith.constant 0 : i32
    %c0_i32_1 = arith.constant 0 : i32
    %c0_i32_2 = arith.constant 0 : i32
    return %c0_i32, %c0_i32_0, %c0_i32_1 : i32, i32, i32
  }
  func.func @transform_2(%arg0: i32, %arg1: i32, %arg2: memref<2x3xi32, #tpu.memory_space<smem>>) -> (i32, i32, i32) {
    %c0_i32 = arith.constant 0 : i32
    %c0_i32_0 = arith.constant 0 : i32
    %c0_i32_1 = arith.constant 0 : i32
    %c0_i32_2 = arith.constant 0 : i32
    return %c0_i32, %c0_i32_0, %c0_i32_1 : i32, i32, i32
  }
  func.func @transform_3(%arg0: i32, %arg1: i32, %arg2: memref<2x3xi32, #tpu.memory_space<smem>>) -> (i32, i32, i32) {
    %c0_i32 = arith.constant 0 : i32
    %c0_i32_0 = arith.constant 0 : i32
    return %arg1, %arg0, %c0_i32 : i32, i32, i32
  }
  func.func @transform_4(%arg0: i32, %arg1: i32, %arg2: memref<2x3xi32, #tpu.memory_space<smem>>) -> (i32, i32) {
    %c0_i32 = arith.constant 0 : i32
    %c0_i32_0 = arith.constant 0 : i32
    return %arg0, %c0_i32 : i32, i32
  }
}

</mosaic_0001>

<llo_original>
// kernel: tpu_custom_call.1
$region0: #{tpu_custom_call.1}
  #allocation0 [shape = 'u32[]', space=smem, size = 0x4, offset = 0x4, fixed_abs, tag = 'smem constant byte address 0x4 - core index']
  #allocation1 [shape = 'u32[72,128]{1,0:T(1,128)}', space=vmem, size = 0x9000, scoped, tag = 'internal scratch']
  #allocation2 [shape = 's32[1]{0}', space=sflag, size = 0x4, scoped, tag = 'scoped memory for tpu_custom_call.1']
  #allocation3 [shape = 'u8[1024]{0}', space=smem, size = 0x400, scoped, tag = 'prefetched SMEM operand 0']
  %s0 = inlined_call_operand.vmem [shape: s32[2,3], index: 0, kind: input, shape index: {}]
  %s1 = inlined_call_operand.vmem [shape: s8[256,256], index: 1, kind: input, shape index: {}]
  %s2 = inlined_call_operand.vmem [shape: bf16[3,256,32], index: 2, kind: input, shape index: {}]
  %s3 = inlined_call_operand.vmem [shape: f32[3,4,256], index: 3, kind: input, shape index: {}]
  %s4 = inlined_call_operand.vmem [shape: f32[3,256,4], index: 4, kind: input, shape index: {}]
  %s5 = inlined_call_operand.vmem [shape: f32[256,32], index: 5, kind: output, shape index: {}]
  %s6 = sld [smem:[#allocation0]]
  $region61: #{tpu_custom_call.1} parent=0
    _
  %s8 = ssub.s32 1, %s6
  %s9 = scalar_select 0, %s8, %s6
  %s11 = sshll.u32 %s0, 4
  %s12 = int_to_ptr.vmem [resolvable:$true] %s11
  %14 = dma.vmem_to_smem %s12, 32, [#allocation3], [#allocation2]
  %16 = dma.done [#allocation2], 32
  %17 = sfence
  loop: start=0, step=1, limit=8
  $region2: #{tpu_custom_call.1} parent=0 // loop_pre_header
    _
  $region3: #{tpu_custom_call.1} parent=0 // loop_header
    %s19 = sphi 0, %s23
    %p20 = scmp.ge.s32.totalorder %s19, 8
    %s26 = sphi 0, %s38
    %s27 = sphi 0, %s34
    %s28 = sphi 0, %s26
    %s29 = sphi 0, %s27
    %s30 = sphi 0, %s28
    %s31 = sphi 0, %s29
    %s41 = sphi 0, %s43
    %s44 = sphi 0, %s41
    %s45 = sphi 0, %s44
    %s61 = sphi 0, %s45
    %s65 = sphi 0, %s65
    %s67 = sphi 0, %s65
    %s68 = sphi 0, %s67
    %s82 = sphi 0, %s68
    %s86 = sphi 0, %s86
    %s88 = sphi 0, %s86
    %s89 = sphi 0, %s88
    %s103 = sphi 0, %s89
    %s111 = sphi 0, %s113
    %s114 = sphi 0, %s111
    %s115 = sphi 0, %s114
    %s131 = sphi 0, %s115
    %s137 = sphi 0, %s139
    %s140 = sphi 0, %s137
    %s141 = sphi 0, %s140
    %s157 = sphi 0, %s141
  $region4: #{tpu_custom_call.1} parent=0 // loop_header_branch
    %22 = sbr.rel (%p20) target = $region8
  $region5: #{tpu_custom_call.1} parent=0 // loop_body
    %s24 = ssub.s32 %s19, 1
    %s25 = ssub.s32 %s19, 2
    %s32 = sadd.s32 1, %s27
    %p33 = scmp.ge.s32.totalorder %s32, 3
    %s34 = scalar_select %p33, 0, %s32
    %s35 = sadd.s32 1, %s26
    %s36 = scalar_select %p33, %s35, %s26
    %p37 = scmp.ge.s32.totalorder %s36, 2
    %s38 = scalar_select %p37, 0, %s36
    %s39 = ssub.s32 %s26, %s38
    %p40 = scmp.eq.s32.totalorder %s39, 0
    %s42 = sadd.s32 %s41, 1
    %s43 = scalar_select %p40, %s41, %s42
    %p46 = pneg %p40
    %p47 = scmp.eq.s32.totalorder %s19, 5
    %p48 = por %p46, %p47
    %p49 = scmp.ne.s32.totalorder %s41, %s44
    %p50 = scmp.eq.s32.totalorder %s19, 0
    %p51 = por %p49, %p50
    %p52 = scmp.ne.s32.totalorder %s41, %s44
    %p53 = scmp.eq.s32.totalorder %s24, 5
    %p54 = por %p52, %p53
    %p55 = scmp.ne.s32.totalorder %s44, %s45
    %p56 = scmp.eq.s32.totalorder %s24, 0
    %p57 = por %p55, %p56
    %p58 = scmp.ne.s32.totalorder %s44, %s45
    %p59 = scmp.eq.s32.totalorder %s25, 5
    %p60 = por %p58, %p59
    %p62 = scmp.ne.s32.totalorder %s45, %s61
    %p63 = scmp.eq.s32.totalorder %s25, 0
    %p64 = por %p62, %p63
    %s66 = sadd.s32 %s65, 1
    %p69 = scmp.eq.s32.totalorder %s19, 5
    %p70 = scmp.ne.s32.totalorder %s65, %s67
    %p71 = scmp.eq.s32.totalorder %s19, 0
    %p72 = por %p70, %p71
    %p73 = scmp.ne.s32.totalorder %s65, %s67
    %p74 = scmp.eq.s32.totalorder %s24, 5
    %p75 = por %p73, %p74
    %p76 = scmp.ne.s32.totalorder %s67, %s68
    %p77 = scmp.eq.s32.totalorder %s24, 0
    %p78 = por %p76, %p77
    %p79 = scmp.ne.s32.totalorder %s67, %s68
    %p80 = scmp.eq.s32.totalorder %s25, 5
    %p81 = por %p79, %p80
    %p83 = scmp.ne.s32.totalorder %s68, %s82
    %p84 = scmp.eq.s32.totalorder %s25, 0
    %p85 = por %p83, %p84
    %s87 = sadd.s32 %s86, 1
    %p90 = scmp.eq.s32.totalorder %s19, 5
    %p91 = scmp.ne.s32.totalorder %s86, %s88
    %p92 = scmp.eq.s32.totalorder %s19, 0
    %p93 = por %p91, %p92
    %p94 = scmp.ne.s32.totalorder %s86, %s88
    %p95 = scmp.eq.s32.totalorder %s24, 5
    %p96 = por %p94, %p95
    %p97 = scmp.ne.s32.totalorder %s88, %s89
    %p98 = scmp.eq.s32.totalorder %s24, 0
    %p99 = por %p97, %p98
    %p100 = scmp.ne.s32.totalorder %s88, %s89
    %p101 = scmp.eq.s32.totalorder %s25, 5
    %p102 = por %p100, %p101
    %p104 = scmp.ne.s32.totalorder %s89, %s103
    %p105 = scmp.eq.s32.totalorder %s25, 0
    %p106 = por %p104, %p105
    %s107 = ssub.s32 %s27, %s34
    %s108 = ssub.s32 %s26, %s38
    %s109 = sor.u32 %s107, %s108
    %p110 = scmp.eq.s32.totalorder %s109, 0
    %s112 = sadd.s32 %s111, 1
    %s113 = scalar_select %p110, %s111, %s112
    %p116 = pneg %p110
    %p117 = scmp.eq.s32.totalorder %s19, 5
    %p118 = por %p116, %p117
    %p119 = scmp.ne.s32.totalorder %s111, %s114
    %p120 = scmp.eq.s32.totalorder %s19, 0
    %p121 = por %p119, %p120
    %p122 = scmp.ne.s32.totalorder %s111, %s114
    %p123 = scmp.eq.s32.totalorder %s24, 5
    %p124 = por %p122, %p123
    %p125 = scmp.ne.s32.totalorder %s114, %s115
    %p126 = scmp.eq.s32.totalorder %s24, 0
    %p127 = por %p125, %p126
    %p128 = scmp.ne.s32.totalorder %s114, %s115
    %p129 = scmp.eq.s32.totalorder %s25, 5
    %p130 = por %p128, %p129
    %p132 = scmp.ne.s32.totalorder %s115, %s131
    %p133 = scmp.eq.s32.totalorder %s25, 0
    %p134 = por %p132, %p133
    %s135 = ssub.s32 %s26, %s38
    %p136 = scmp.eq.s32.totalorder %s135, 0
    %s138 = sadd.s32 %s137, 1
    %s139 = scalar_select %p136, %s137, %s138
    %p142 = pneg %p136
    %p143 = scmp.eq.s32.totalorder %s19, 5
    %p144 = por %p142, %p143
    %p145 = scmp.ne.s32.totalorder %s137, %s140
    %p146 = scmp.eq.s32.totalorder %s19, 0
    %p147 = por %p145, %p146
    %p148 = scmp.ne.s32.totalorder %s137, %s140
    %p149 = scmp.eq.s32.totalorder %s24, 5
    %p150 = por %p148, %p149
    %p151 = scmp.ne.s32.totalorder %s140, %s141
    %p152 = scmp.eq.s32.totalorder %s24, 0
    %p153 = por %p151, %p152
    %p154 = scmp.ne.s32.totalorder %s140, %s141
    %p155 = scmp.eq.s32.totalorder %s25, 5
    %p156 = por %p154, %p155
    %p158 = scmp.ne.s32.totalorder %s141, %s157
    %p159 = scmp.eq.s32.totalorder %s25, 0
    %p160 = por %p158, %p159
    %p161 = scmp.le.s32.totalorder 1, %s19
    %p162 = scmp.lt.s32.totalorder %s19, 7
    %p163 = pnand %p161, %p162
    %p164 = pneg %p163
    // Predicated region
    $region9: #{tpu_custom_call.1} parent=5 // pred_check
      _
    $region10: #{tpu_custom_call.1} parent=5 // pred_check_branch
      %166 = sbr.rel (%p163) target = $region12
    $region11: #{tpu_custom_call.1} parent=5 // pred_region
      %s167 = ssub.s32 %s19, 1
      // Predicated region
      $region13: #{tpu_custom_call.1} parent=11 // pred_check
        %p168 = pneg %p78
      $region14: #{tpu_custom_call.1} parent=11 // pred_check_branch
        %170 = sbr.rel (%p168) target = $region16
      $region15: #{tpu_custom_call.1} parent=11 // pred_region
        _
      $region16: #{tpu_custom_call.1} parent=11 // pred_fallthru
        _
      // Predicated region
      $region17: #{tpu_custom_call.1} parent=11 // pred_check
        %p171 = pneg %p99
      $region18: #{tpu_custom_call.1} parent=11 // pred_check_branch
        %173 = sbr.rel (%p171) target = $region20
      $region19: #{tpu_custom_call.1} parent=11 // pred_region
        _
      $region20: #{tpu_custom_call.1} parent=11 // pred_fallthru
        _
    $region12: #{tpu_custom_call.1} parent=5 // pred_fallthru
      _
    %p174 = scmp.lt.s32.totalorder %s19, 6
    // Predicated region
    $region21: #{tpu_custom_call.1} parent=5 // pred_check
      %p175 = pneg %p174
    $region22: #{tpu_custom_call.1} parent=5 // pred_check_branch
      %177 = sbr.rel (%p175) target = $region24
    $region23: #{tpu_custom_call.1} parent=5 // pred_region
      // Predicated region
      $region25: #{tpu_custom_call.1} parent=23 // pred_check
        %p178 = pneg %p51
      $region26: #{tpu_custom_call.1} parent=23 // pred_check_branch
        %180 = sbr.rel (%p178) target = $region28
      $region27: #{tpu_custom_call.1} parent=23 // pred_region
        %s181 = smul.u32 4, %s26
        %p182 = scmp.lt.s32.totalorder %s181, 7
        %s183 = scalar_select %p182, %s181, 7
        %s184 = smul.addr %s183, 2
        %s185 = smul.addr %s184, 8
        %s186 = scalar_lea.vmem %s1, %s185
        %s187 = smul.u32 4, %s26
      $region28: #{tpu_custom_call.1} parent=23 // pred_fallthru
        _
      // Predicated region
      $region29: #{tpu_custom_call.1} parent=23 // pred_check
        %p188 = pneg %p121
      $region30: #{tpu_custom_call.1} parent=23 // pred_check_branch
        %190 = sbr.rel (%p188) target = $region32
      $region31: #{tpu_custom_call.1} parent=23 // pred_region
        %s191 = smul.u32 16, %s26
        %p192 = scmp.lt.s32.totalorder %s27, 2
        %s193 = scalar_select %p192, %s27, 2
        %p194 = scmp.lt.s32.totalorder %s191, 31
        %s195 = scalar_select %p194, %s191, 31
        %s196 = smul.addr %s193, 32
        %s197 = sadd.s32 %s195, %s196
        %s198 = smul.addr %s197, 8
        %s199 = scalar_lea.vmem %s4, %s198
        %s200 = smul.u32 16, %s26
      $region32: #{tpu_custom_call.1} parent=23 // pred_fallthru
        _
    $region24: #{tpu_custom_call.1} parent=5 // pred_fallthru
      _
    %p201 = scmp.le.s32.totalorder 1, %s19
    %p202 = scmp.lt.s32.totalorder %s19, 7
    %p203 = pnand %p201, %p202
    %p204 = pneg %p203
    // Predicated region
    $region33: #{tpu_custom_call.1} parent=5 // pred_check
      _
    $region34: #{tpu_custom_call.1} parent=5 // pred_check_branch
      %206 = sbr.rel (%p203) target = $region36
    $region35: #{tpu_custom_call.1} parent=5 // pred_region
      %s207 = ssub.s32 %s19, 1
      %s208 = smul.u32 4, %s28
      %p209 = scmp.lt.s32.totalorder %s208, 7
      %s210 = scalar_select %p209, %s208, 7
      %s211 = smul.addr %s210, 2
      %s212 = smul.addr %s211, 8
      %s213 = scalar_lea.vmem %s1, %s212
      %p214 = pneg %p57
      %p215 = pneg %p54
      %p216 = pneg %p78
      %p217 = pneg %p75
      %p218 = pneg %p99
      %p219 = pneg %p96
      %s220 = smul.u32 16, %s28
      %p221 = scmp.lt.s32.totalorder %s29, 2
      %s222 = scalar_select %p221, %s29, 2
      %p223 = scmp.lt.s32.totalorder %s220, 31
      %s224 = scalar_select %p223, %s220, 31
      %s225 = smul.addr %s222, 32
      %s226 = sadd.s32 %s224, %s225
      %s227 = smul.addr %s226, 8
      %s228 = scalar_lea.vmem %s4, %s227
      %p229 = pneg %p127
      %p230 = pneg %p124
      %p231 = pneg %p153
      %p232 = pneg %p150
      %s233 = smul.u32 16, %s28
      %p234 = scmp.lt.s32.totalorder %s233, 31
      %s235 = scalar_select %p234, %s233, 31
      %s236 = smul.addr %s235, 8
      %s237 = scalar_lea.vmem %s5, %s236
      %s238 = smul.u32 4, %s28
      %p239 = scmp.lt.s32.totalorder %s238, 7
      %s240 = scalar_select %p239, %s238, 7
      %s241 = smul.addr %s240, 2
      %s242 = smul.addr %s241, 8
      %s243 = scalar_lea.vmem %s1, %s242
      %s244 = smul.u32 4, %s28
      %s245 = smul.u32 16, %s28
      %p246 = scmp.lt.s32.totalorder %s29, 2
      %s247 = scalar_select %p246, %s29, 2
      %p248 = scmp.lt.s32.totalorder %s245, 31
      %s249 = scalar_select %p248, %s245, 31
      %s250 = smul.addr %s247, 32
      %s251 = sadd.s32 %s249, %s250
      %s252 = smul.addr %s251, 8
      %s253 = scalar_lea.vmem %s4, %s252
      %s254 = smul.u32 16, %s28
      %s255 = smul.u32 16, %s28
      %p256 = scmp.lt.s32.totalorder %s255, 31
      %s257 = scalar_select %p256, %s255, 31
      %s258 = smul.addr %s257, 8
      %s259 = scalar_lea.vmem %s5, %s258
      %s260 = smul.u32 16, %s28
      %p261 = scmp.eq.s32.totalorder %s29, 0
      // Predicated region
      $region37: #{tpu_custom_call.1} parent=35 // pred_check
        %p262 = pneg %p261
      $region38: #{tpu_custom_call.1} parent=35 // pred_check_branch
        %264 = sbr.rel (%p262) target = $region40
      $region39: #{tpu_custom_call.1} parent=35 // pred_region
        %vm265 = vcmask 261120
        %266 = vst.msk [vmem:[%s259] sm:$0xff] %vm265, 0.0
        %267 = vst.msk [vmem:[%s259 + $0x8] sm:$0xff] %vm265, 0.0
        %268 = vst.msk [vmem:[%s259 + $0x10] sm:$0xff] %vm265, 0.0
        %269 = vst.msk [vmem:[%s259 + $0x18] sm:$0xff] %vm265, 0.0
        %270 = vst.msk [vmem:[%s259 + $0x20] sm:$0xff] %vm265, 0.0
        %271 = vst.msk [vmem:[%s259 + $0x28] sm:$0xff] %vm265, 0.0
        %272 = vst.msk [vmem:[%s259 + $0x30] sm:$0xff] %vm265, 0.0
        %273 = vst.msk [vmem:[%s259 + $0x38] sm:$0xff] %vm265, 0.0
        %274 = vst.msk [vmem:[%s259 + $0x40] sm:$0xff] %vm265, 0.0
        %275 = vst.msk [vmem:[%s259 + $0x48] sm:$0xff] %vm265, 0.0
        %276 = vst.msk [vmem:[%s259 + $0x50] sm:$0xff] %vm265, 0.0
        %277 = vst.msk [vmem:[%s259 + $0x58] sm:$0xff] %vm265, 0.0
        %278 = vst.msk [vmem:[%s259 + $0x60] sm:$0xff] %vm265, 0.0
        %279 = vst.msk [vmem:[%s259 + $0x68] sm:$0xff] %vm265, 0.0
        %280 = vst.msk [vmem:[%s259 + $0x70] sm:$0xff] %vm265, 0.0
        %281 = vst.msk [vmem:[%s259 + $0x78] sm:$0xff] %vm265, 0.0
      $region40: #{tpu_custom_call.1} parent=35 // pred_fallthru
        _
      %s282 = sshra.s32 %s29, 7
      %s283 = sand.u32 %s29, 127
      %s284 = sadd.s32 %s282, %s28
      %s285 = smul.u32 %s284, 128
      %s286 = sshra.s32 %s29, 7
      %s287 = sand.u32 %s29, 127
      %s288 = sadd.s32 %s285, %s287
      %s289 = sld [smem:[#allocation3 + %s288]]
      %p290 = scmp.gt.s32.totalorder %s289, 0
      // Predicated region
      $region41: #{tpu_custom_call.1} parent=35 // pred_check
        %p291 = pneg %p290
      $region42: #{tpu_custom_call.1} parent=35 // pred_check_branch
        %293 = sbr.rel (%p291) target = $region44
      $region43: #{tpu_custom_call.1} parent=35 // pred_region
        %v294 = vld [vmem:[%s243] sm:$0xff]
        %v295 = vld [vmem:[%s243 + $0x8] sm:$0xff]
        %v296 = vld [vmem:[%s243 + $0x10] sm:$0xff]
        %v297 = vld [vmem:[%s243 + $0x18] sm:$0xff]
        %v298 = vld [vmem:[%s243 + $0x20] sm:$0xff]
        %v299 = vld [vmem:[%s243 + $0x28] sm:$0xff]
        %v300 = vld [vmem:[%s243 + $0x30] sm:$0xff]
        %v301 = vld [vmem:[%s243 + $0x38] sm:$0xff]
        %v302 = vunpack.c.0.s8 %v294
        %v303 = vunpack.c.0.s8 %v295
        %v304 = vunpack.c.1.s8 %v294
        %v305 = vunpack.c.1.s8 %v295
        %v306 = vunpack.c.2.s8 %v294
        %v307 = vunpack.c.2.s8 %v295
        %v308 = vunpack.c.3.s8 %v294
        %v309 = vunpack.c.3.s8 %v295
        %v310 = vunpack.c.0.s8 %v296
        %v311 = vunpack.c.0.s8 %v297
        %v312 = vunpack.c.1.s8 %v296
        %v313 = vunpack.c.1.s8 %v297
        %v314 = vunpack.c.2.s8 %v296
        %v315 = vunpack.c.2.s8 %v297
        %v316 = vunpack.c.3.s8 %v296
        %v317 = vunpack.c.3.s8 %v297
        %v318 = vunpack.c.0.s8 %v298
        %v319 = vunpack.c.0.s8 %v299
        %v320 = vunpack.c.1.s8 %v298
        %v321 = vunpack.c.1.s8 %v299
        %v322 = vunpack.c.2.s8 %v298
        %v323 = vunpack.c.2.s8 %v299
        %v324 = vunpack.c.3.s8 %v298
        %v325 = vunpack.c.3.s8 %v299
        %v326 = vunpack.c.0.s8 %v300
        %v327 = vunpack.c.0.s8 %v301
        %v328 = vunpack.c.1.s8 %v300
        %v329 = vunpack.c.1.s8 %v301
        %v330 = vunpack.c.2.s8 %v300
        %v331 = vunpack.c.2.s8 %v301
        %v332 = vunpack.c.3.s8 %v300
        %v333 = vunpack.c.3.s8 %v301
        %vm334 = vcmp.ne.s32.totalorder %v302, 0
        %vm335 = vcmp.ne.s32.totalorder %v303, 0
        %vm336 = vcmp.ne.s32.totalorder %v304, 0
        %vm337 = vcmp.ne.s32.totalorder %v305, 0
        %vm338 = vcmp.ne.s32.totalorder %v306, 0
        %vm339 = vcmp.ne.s32.totalorder %v307, 0
        %vm340 = vcmp.ne.s32.totalorder %v308, 0
        %vm341 = vcmp.ne.s32.totalorder %v309, 0
        %vm342 = vcmp.ne.s32.totalorder %v310, 0
        %vm343 = vcmp.ne.s32.totalorder %v311, 0
        %vm344 = vcmp.ne.s32.totalorder %v312, 0
        %vm345 = vcmp.ne.s32.totalorder %v313, 0
        %vm346 = vcmp.ne.s32.totalorder %v314, 0
        %vm347 = vcmp.ne.s32.totalorder %v315, 0
        %vm348 = vcmp.ne.s32.totalorder %v316, 0
        %vm349 = vcmp.ne.s32.totalorder %v317, 0
        %vm350 = vcmp.ne.s32.totalorder %v318, 0
        %vm351 = vcmp.ne.s32.totalorder %v319, 0
        %vm352 = vcmp.ne.s32.totalorder %v320, 0
        %vm353 = vcmp.ne.s32.totalorder %v321, 0
        %vm354 = vcmp.ne.s32.totalorder %v322, 0
        %vm355 = vcmp.ne.s32.totalorder %v323, 0
        %vm356 = vcmp.ne.s32.totalorder %v324, 0
        %vm357 = vcmp.ne.s32.totalorder %v325, 0
        %vm358 = vcmp.ne.s32.totalorder %v326, 0
        %vm359 = vcmp.ne.s32.totalorder %v327, 0
        %vm360 = vcmp.ne.s32.totalorder %v328, 0
        %vm361 = vcmp.ne.s32.totalorder %v329, 0
        %vm362 = vcmp.ne.s32.totalorder %v330, 0
        %vm363 = vcmp.ne.s32.totalorder %v331, 0
        %vm364 = vcmp.ne.s32.totalorder %v332, 0
        %vm365 = vcmp.ne.s32.totalorder %v333, 0
        %s366 = sadd.s32 %s29, 1
        %v367 = vstv %s366
        %vm368 = vcmp.eq.s32.totalorder %v302, %v367
        %vm369 = vcmp.eq.s32.totalorder %v303, %v367
        %vm370 = vcmp.eq.s32.totalorder %v304, %v367
        %vm371 = vcmp.eq.s32.totalorder %v305, %v367
        %vm372 = vcmp.eq.s32.totalorder %v306, %v367
        %vm373 = vcmp.eq.s32.totalorder %v307, %v367
        %vm374 = vcmp.eq.s32.totalorder %v308, %v367
        %vm375 = vcmp.eq.s32.totalorder %v309, %v367
        %vm376 = vcmp.eq.s32.totalorder %v310, %v367
        %vm377 = vcmp.eq.s32.totalorder %v311, %v367
        %vm378 = vcmp.eq.s32.totalorder %v312, %v367
        %vm379 = vcmp.eq.s32.totalorder %v313, %v367
        %vm380 = vcmp.eq.s32.totalorder %v314, %v367
        %vm381 = vcmp.eq.s32.totalorder %v315, %v367
        %vm382 = vcmp.eq.s32.totalorder %v316, %v367
        %vm383 = vcmp.eq.s32.totalorder %v317, %v367
        %vm384 = vcmp.eq.s32.totalorder %v318, %v367
        %vm385 = vcmp.eq.s32.totalorder %v319, %v367
        %vm386 = vcmp.eq.s32.totalorder %v320, %v367
        %vm387 = vcmp.eq.s32.totalorder %v321, %v367
        %vm388 = vcmp.eq.s32.totalorder %v322, %v367
        %vm389 = vcmp.eq.s32.totalorder %v323, %v367
        %vm390 = vcmp.eq.s32.totalorder %v324, %v367
        %vm391 = vcmp.eq.s32.totalorder %v325, %v367
        %vm392 = vcmp.eq.s32.totalorder %v326, %v367
        %vm393 = vcmp.eq.s32.totalorder %v327, %v367
        %vm394 = vcmp.eq.s32.totalorder %v328, %v367
        %vm395 = vcmp.eq.s32.totalorder %v329, %v367
        %vm396 = vcmp.eq.s32.totalorder %v330, %v367
        %vm397 = vcmp.eq.s32.totalorder %v331, %v367
        %vm398 = vcmp.eq.s32.totalorder %v332, %v367
        %vm399 = vcmp.eq.s32.totalorder %v333, %v367
        %s400 = smul.u32 %s29, 32
        %s401 = smul.addr %s400, 4
        %s402 = scalar_lea.vmem %s2, %s401
        %v403 = vld [vmem:[%s402] sm:$0xf]
        %v404 = vld [vmem:[%s402 + $0x4] sm:$0xf]
        %v405 = vld [vmem:[%s402 + $0x8] sm:$0xf]
        %v406 = vld [vmem:[%s402 + $0xc] sm:$0xf]
        %v407 = vld [vmem:[%s402 + $0x10] sm:$0xf]
        %v408 = vld [vmem:[%s402 + $0x14] sm:$0xf]
        %v409 = vld [vmem:[%s402 + $0x18] sm:$0xf]
        %v410 = vld [vmem:[%s402 + $0x1c] sm:$0xf]
        %v411 = vld [vmem:[%s402 + $0x20] sm:$0xf]
        %v412 = vld [vmem:[%s402 + $0x24] sm:$0xf]
        %v413 = vld [vmem:[%s402 + $0x28] sm:$0xf]
        %v414 = vld [vmem:[%s402 + $0x2c] sm:$0xf]
        %v415 = vld [vmem:[%s402 + $0x30] sm:$0xf]
        %v416 = vld [vmem:[%s402 + $0x34] sm:$0xf]
        %v417 = vld [vmem:[%s402 + $0x38] sm:$0xf]
        %v418 = vld [vmem:[%s402 + $0x3c] sm:$0xf]
        %v419 = vld [vmem:[%s402 + $0x40] sm:$0xf]
        %v420 = vld [vmem:[%s402 + $0x44] sm:$0xf]
        %v421 = vld [vmem:[%s402 + $0x48] sm:$0xf]
        %v422 = vld [vmem:[%s402 + $0x4c] sm:$0xf]
        %v423 = vld [vmem:[%s402 + $0x50] sm:$0xf]
        %v424 = vld [vmem:[%s402 + $0x54] sm:$0xf]
        %v425 = vld [vmem:[%s402 + $0x58] sm:$0xf]
        %v426 = vld [vmem:[%s402 + $0x5c] sm:$0xf]
        %v427 = vld [vmem:[%s402 + $0x60] sm:$0xf]
        %v428 = vld [vmem:[%s402 + $0x64] sm:$0xf]
        %v429 = vld [vmem:[%s402 + $0x68] sm:$0xf]
        %v430 = vld [vmem:[%s402 + $0x6c] sm:$0xf]
        %v431 = vld [vmem:[%s402 + $0x70] sm:$0xf]
        %v432 = vld [vmem:[%s402 + $0x74] sm:$0xf]
        %v433 = vld [vmem:[%s402 + $0x78] sm:$0xf]
        %v434 = vld [vmem:[%s402 + $0x7c] sm:$0xf]
        %s435 = smul.u32 %s29, 2
        %s436 = smul.addr %s435, 4
        %s437 = scalar_lea.vmem %s3, %s436
        %v438 = vld [vmem:[%s437] sm:$0xff]
        %v439 = vld [vmem:[%s253] sm:$0xff]
        %v440 = vld [vmem:[%s253 + $0x8] sm:$0xff]
        %v441 = vld [vmem:[%s253 + $0x10] sm:$0xff]
        %v442 = vld [vmem:[%s253 + $0x18] sm:$0xff]
        %v443 = vld [vmem:[%s253 + $0x20] sm:$0xff]
        %v444 = vld [vmem:[%s253 + $0x28] sm:$0xff]
        %v445 = vld [vmem:[%s253 + $0x30] sm:$0xff]
        %v446 = vld [vmem:[%s253 + $0x38] sm:$0xff]
        %v447 = vld [vmem:[%s253 + $0x40] sm:$0xff]
        %v448 = vld [vmem:[%s253 + $0x48] sm:$0xff]
        %v449 = vld [vmem:[%s253 + $0x50] sm:$0xff]
        %v450 = vld [vmem:[%s253 + $0x58] sm:$0xff]
        %v451 = vld [vmem:[%s253 + $0x60] sm:$0xff]
        %v452 = vld [vmem:[%s253 + $0x68] sm:$0xff]
        %v453 = vld [vmem:[%s253 + $0x70] sm:$0xff]
        %v454 = vld [vmem:[%s253 + $0x78] sm:$0xff]
        %456 = vset.pattern.permute.xlu0 0
        %457 = vperm.xlu0 %456, %v439
        %v458 = vpop.permute.xlu0 %457
        %461 = vset.pattern.permute.xlu0 0
        %462 = vperm.xlu0 %461, %v440
        %v463 = vpop.permute.xlu0 %462
        %466 = vset.pattern.permute.xlu0 0
        %467 = vperm.xlu0 %466, %v441
        %v468 = vpop.permute.xlu0 %467
        %471 = vset.pattern.permute.xlu0 0
        %472 = vperm.xlu0 %471, %v442
        %v473 = vpop.permute.xlu0 %472
        %476 = vset.pattern.permute.xlu0 0
        %477 = vperm.xlu0 %476, %v443
        %v478 = vpop.permute.xlu0 %477
        %481 = vset.pattern.permute.xlu0 0
        %482 = vperm.xlu0 %481, %v444
        %v483 = vpop.permute.xlu0 %482
        %486 = vset.pattern.permute.xlu0 0
        %487 = vperm.xlu0 %486, %v445
        %v488 = vpop.permute.xlu0 %487
        %491 = vset.pattern.permute.xlu0 0
        %492 = vperm.xlu0 %491, %v446
        %v493 = vpop.permute.xlu0 %492
        %496 = vset.pattern.permute.xlu0 0
        %497 = vperm.xlu0 %496, %v447
        %v498 = vpop.permute.xlu0 %497
        %501 = vset.pattern.permute.xlu0 0
        %502 = vperm.xlu0 %501, %v448
        %v503 = vpop.permute.xlu0 %502
        %506 = vset.pattern.permute.xlu0 0
        %507 = vperm.xlu0 %506, %v449
        %v508 = vpop.permute.xlu0 %507
        %511 = vset.pattern.permute.xlu0 0
        %512 = vperm.xlu0 %511, %v450
        %v513 = vpop.permute.xlu0 %512
        %516 = vset.pattern.permute.xlu0 0
        %517 = vperm.xlu0 %516, %v451
        %v518 = vpop.permute.xlu0 %517
        %521 = vset.pattern.permute.xlu0 0
        %522 = vperm.xlu0 %521, %v452
        %v523 = vpop.permute.xlu0 %522
        %526 = vset.pattern.permute.xlu0 0
        %527 = vperm.xlu0 %526, %v453
        %v528 = vpop.permute.xlu0 %527
        %531 = vset.pattern.permute.xlu0 0
        %532 = vperm.xlu0 %531, %v454
        %v533 = vpop.permute.xlu0 %532
        %v536 = vperm.slane %v438, 0
        %v537 = vperm.slane %v438, 4
        %v540 = vperm.slane %v536, 0
        %v541 = vperm.slane %v537, 0
        %v542 = vadd.f32 %v458, %v540
        %v543 = vadd.f32 %v458, %v541
        %v544 = vadd.f32 %v463, %v540
        %v545 = vadd.f32 %v463, %v541
        %v546 = vadd.f32 %v468, %v540
        %v547 = vadd.f32 %v468, %v541
        %v548 = vadd.f32 %v473, %v540
        %v549 = vadd.f32 %v473, %v541
        %v550 = vadd.f32 %v478, %v540
        %v551 = vadd.f32 %v478, %v541
        %v552 = vadd.f32 %v483, %v540
        %v553 = vadd.f32 %v483, %v541
        %v554 = vadd.f32 %v488, %v540
        %v555 = vadd.f32 %v488, %v541
        %v556 = vadd.f32 %v493, %v540
        %v557 = vadd.f32 %v493, %v541
        %v558 = vadd.f32 %v498, %v540
        %v559 = vadd.f32 %v498, %v541
        %v560 = vadd.f32 %v503, %v540
        %v561 = vadd.f32 %v503, %v541
        %v562 = vadd.f32 %v508, %v540
        %v563 = vadd.f32 %v508, %v541
        %v564 = vadd.f32 %v513, %v540
        %v565 = vadd.f32 %v513, %v541
        %v566 = vadd.f32 %v518, %v540
        %v567 = vadd.f32 %v518, %v541
        %v568 = vadd.f32 %v523, %v540
        %v569 = vadd.f32 %v523, %v541
        %v570 = vadd.f32 %v528, %v540
        %v571 = vadd.f32 %v528, %v541
        %v572 = vadd.f32 %v533, %v540
        %v573 = vadd.f32 %v533, %v541
        %v574 = vmul.f32 %v542, 0.2
        %v575 = vmul.f32 %v543, 0.2
        %v576 = vmul.f32 %v544, 0.2
        %v577 = vmul.f32 %v545, 0.2
        %v578 = vmul.f32 %v546, 0.2
        %v579 = vmul.f32 %v547, 0.2
        %v580 = vmul.f32 %v548, 0.2
        %v581 = vmul.f32 %v549, 0.2
        %v582 = vmul.f32 %v550, 0.2
        %v583 = vmul.f32 %v551, 0.2
        %v584 = vmul.f32 %v552, 0.2
        %v585 = vmul.f32 %v553, 0.2
        %v586 = vmul.f32 %v554, 0.2
        %v587 = vmul.f32 %v555, 0.2
        %v588 = vmul.f32 %v556, 0.2
        %v589 = vmul.f32 %v557, 0.2
        %v590 = vmul.f32 %v558, 0.2
        %v591 = vmul.f32 %v559, 0.2
        %v592 = vmul.f32 %v560, 0.2
        %v593 = vmul.f32 %v561, 0.2
        %v594 = vmul.f32 %v562, 0.2
        %v595 = vmul.f32 %v563, 0.2
        %v596 = vmul.f32 %v564, 0.2
        %v597 = vmul.f32 %v565, 0.2
        %v598 = vmul.f32 %v566, 0.2
        %v599 = vmul.f32 %v567, 0.2
        %v600 = vmul.f32 %v568, 0.2
        %v601 = vmul.f32 %v569, 0.2
        %v602 = vmul.f32 %v570, 0.2
        %v603 = vmul.f32 %v571, 0.2
        %v604 = vmul.f32 %v572, 0.2
        %v605 = vmul.f32 %v573, 0.2
        %v606 = vmax.f32 %v542, %v574
        %v607 = vmax.f32 %v543, %v575
        %v608 = vmax.f32 %v544, %v576
        %v609 = vmax.f32 %v545, %v577
        %v610 = vmax.f32 %v546, %v578
        %v611 = vmax.f32 %v547, %v579
        %v612 = vmax.f32 %v548, %v580
        %v613 = vmax.f32 %v549, %v581
        %v614 = vmax.f32 %v550, %v582
        %v615 = vmax.f32 %v551, %v583
        %v616 = vmax.f32 %v552, %v584
        %v617 = vmax.f32 %v553, %v585
        %v618 = vmax.f32 %v554, %v586
        %v619 = vmax.f32 %v555, %v587
        %v620 = vmax.f32 %v556, %v588
        %v621 = vmax.f32 %v557, %v589
        %v622 = vmax.f32 %v558, %v590
        %v623 = vmax.f32 %v559, %v591
        %v624 = vmax.f32 %v560, %v592
        %v625 = vmax.f32 %v561, %v593
        %v626 = vmax.f32 %v562, %v594
        %v627 = vmax.f32 %v563, %v595
        %v628 = vmax.f32 %v564, %v596
        %v629 = vmax.f32 %v565, %v597
        %v630 = vmax.f32 %v566, %v598
        %v631 = vmax.f32 %v567, %v599
        %v632 = vmax.f32 %v568, %v600
        %v633 = vmax.f32 %v569, %v601
        %v634 = vmax.f32 %v570, %v602
        %v635 = vmax.f32 %v571, %v603
        %v636 = vmax.f32 %v572, %v604
        %v637 = vmax.f32 %v573, %v605
        %v638 = vsel %vm334, %v606, -1e+30
        %v639 = vsel %vm335, %v607, -1e+30
        %v640 = vsel %vm336, %v608, -1e+30
        %v641 = vsel %vm337, %v609, -1e+30
        %v642 = vsel %vm338, %v610, -1e+30
        %v643 = vsel %vm339, %v611, -1e+30
        %v644 = vsel %vm340, %v612, -1e+30
        %v645 = vsel %vm341, %v613, -1e+30
        %v646 = vsel %vm342, %v614, -1e+30
        %v647 = vsel %vm343, %v615, -1e+30
        %v648 = vsel %vm344, %v616, -1e+30
        %v649 = vsel %vm345, %v617, -1e+30
        %v650 = vsel %vm346, %v618, -1e+30
        %v651 = vsel %vm347, %v619, -1e+30
        %v652 = vsel %vm348, %v620, -1e+30
        %v653 = vsel %vm349, %v621, -1e+30
        %v654 = vsel %vm350, %v622, -1e+30
        %v655 = vsel %vm351, %v623, -1e+30
        %v656 = vsel %vm352, %v624, -1e+30
        %v657 = vsel %vm353, %v625, -1e+30
        %v658 = vsel %vm354, %v626, -1e+30
        %v659 = vsel %vm355, %v627, -1e+30
        %v660 = vsel %vm356, %v628, -1e+30
        %v661 = vsel %vm357, %v629, -1e+30
        %v662 = vsel %vm358, %v630, -1e+30
        %v663 = vsel %vm359, %v631, -1e+30
        %v664 = vsel %vm360, %v632, -1e+30
        %v665 = vsel %vm361, %v633, -1e+30
        %v666 = vsel %vm362, %v634, -1e+30
        %v667 = vsel %vm363, %v635, -1e+30
        %v668 = vsel %vm364, %v636, -1e+30
        %v669 = vsel %vm365, %v637, -1e+30
        %v670 = vmax.f32 %v638, %v639
        %671 = vmax.xlane.f32.xlu0 %v670
        %v672 = vpop.xlane.xlu0 %671
        %v673 = vmax.f32 %v640, %v641
        %674 = vmax.xlane.f32.xlu0 %v673
        %v675 = vpop.xlane.xlu0 %674
        %v676 = vmax.f32 %v642, %v643
        %677 = vmax.xlane.f32.xlu0 %v676
        %v678 = vpop.xlane.xlu0 %677
        %v679 = vmax.f32 %v644, %v645
        %680 = vmax.xlane.f32.xlu0 %v679
        %v681 = vpop.xlane.xlu0 %680
        %v682 = vmax.f32 %v646, %v647
        %683 = vmax.xlane.f32.xlu0 %v682
        %v684 = vpop.xlane.xlu0 %683
        %v685 = vmax.f32 %v648, %v649
        %686 = vmax.xlane.f32.xlu0 %v685
        %v687 = vpop.xlane.xlu0 %686
        %v688 = vmax.f32 %v650, %v651
        %689 = vmax.xlane.f32.xlu0 %v688
        %v690 = vpop.xlane.xlu0 %689
        %v691 = vmax.f32 %v652, %v653
        %692 = vmax.xlane.f32.xlu0 %v691
        %v693 = vpop.xlane.xlu0 %692
        %v694 = vmax.f32 %v654, %v655
        %695 = vmax.xlane.f32.xlu0 %v694
        %v696 = vpop.xlane.xlu0 %695
        %v697 = vmax.f32 %v656, %v657
        %698 = vmax.xlane.f32.xlu0 %v697
        %v699 = vpop.xlane.xlu0 %698
        %v700 = vmax.f32 %v658, %v659
        %701 = vmax.xlane.f32.xlu0 %v700
        %v702 = vpop.xlane.xlu0 %701
        %v703 = vmax.f32 %v660, %v661
        %704 = vmax.xlane.f32.xlu0 %v703
        %v705 = vpop.xlane.xlu0 %704
        %v706 = vmax.f32 %v662, %v663
        %707 = vmax.xlane.f32.xlu0 %v706
        %v708 = vpop.xlane.xlu0 %707
        %v709 = vmax.f32 %v664, %v665
        %710 = vmax.xlane.f32.xlu0 %v709
        %v711 = vpop.xlane.xlu0 %710
        %v712 = vmax.f32 %v666, %v667
        %713 = vmax.xlane.f32.xlu0 %v712
        %v714 = vpop.xlane.xlu0 %713
        %v715 = vmax.f32 %v668, %v669
        %716 = vmax.xlane.f32.xlu0 %v715
        %v717 = vpop.xlane.xlu0 %716
        %v718 = vsub.f32 %v638, %v672
        %v719 = vsub.f32 %v639, %v672
        %v720 = vsub.f32 %v640, %v675
        %v721 = vsub.f32 %v641, %v675
        %v722 = vsub.f32 %v642, %v678
        %v723 = vsub.f32 %v643, %v678
        %v724 = vsub.f32 %v644, %v681
        %v725 = vsub.f32 %v645, %v681
        %v726 = vsub.f32 %v646, %v684
        %v727 = vsub.f32 %v647, %v684
        %v728 = vsub.f32 %v648, %v687
        %v729 = vsub.f32 %v649, %v687
        %v730 = vsub.f32 %v650, %v690
        %v731 = vsub.f32 %v651, %v690
        %v732 = vsub.f32 %v652, %v693
        %v733 = vsub.f32 %v653, %v693
        %v734 = vsub.f32 %v654, %v696
        %v735 = vsub.f32 %v655, %v696
        %v736 = vsub.f32 %v656, %v699
        %v737 = vsub.f32 %v657, %v699
        %v738 = vsub.f32 %v658, %v702
        %v739 = vsub.f32 %v659, %v702
        %v740 = vsub.f32 %v660, %v705
        %v741 = vsub.f32 %v661, %v705
        %v742 = vsub.f32 %v662, %v708
        %v743 = vsub.f32 %v663, %v708
        %v744 = vsub.f32 %v664, %v711
        %v745 = vsub.f32 %v665, %v711
        %v746 = vsub.f32 %v666, %v714
        %v747 = vsub.f32 %v667, %v714
        %v748 = vsub.f32 %v668, %v717
        %v749 = vsub.f32 %v669, %v717
        %v750 = vmul.f32 %v718, 1.442695
        %v751 = vpow.pop %v750
        %v752 = vmul.f32 %v719, 1.442695
        %v753 = vpow.pop %v752
        %v754 = vmul.f32 %v720, 1.442695
        %v755 = vpow.pop %v754
        %v756 = vmul.f32 %v721, 1.442695
        %v757 = vpow.pop %v756
        %v758 = vmul.f32 %v722, 1.442695
        %v759 = vpow.pop %v758
        %v760 = vmul.f32 %v723, 1.442695
        %v761 = vpow.pop %v760
        %v762 = vmul.f32 %v724, 1.442695
        %v763 = vpow.pop %v762
        %v764 = vmul.f32 %v725, 1.442695
        %v765 = vpow.pop %v764
        %v766 = vmul.f32 %v726, 1.442695
        %v767 = vpow.pop %v766
        %v768 = vmul.f32 %v727, 1.442695
        %v769 = vpow.pop %v768
        %v770 = vmul.f32 %v728, 1.442695
        %v771 = vpow.pop %v770
        %v772 = vmul.f32 %v729, 1.442695
        %v773 = vpow.pop %v772
        %v774 = vmul.f32 %v730, 1.442695
        %v775 = vpow.pop %v774
        %v776 = vmul.f32 %v731, 1.442695
        %v777 = vpow.pop %v776
        %v778 = vmul.f32 %v732, 1.442695
        %v779 = vpow.pop %v778
        %v780 = vmul.f32 %v733, 1.442695
        %v781 = vpow.pop %v780
        %v782 = vmul.f32 %v734, 1.442695
        %v783 = vpow.pop %v782
        %v784 = vmul.f32 %v735, 1.442695
        %v785 = vpow.pop %v784
        %v786 = vmul.f32 %v736, 1.442695
        %v787 = vpow.pop %v786
        %v788 = vmul.f32 %v737, 1.442695
        %v789 = vpow.pop %v788
        %v790 = vmul.f32 %v738, 1.442695
        %v791 = vpow.pop %v790
        %v792 = vmul.f32 %v739, 1.442695
        %v793 = vpow.pop %v792
        %v794 = vmul.f32 %v740, 1.442695
        %v795 = vpow.pop %v794
        %v796 = vmul.f32 %v741, 1.442695
        %v797 = vpow.pop %v796
        %v798 = vmul.f32 %v742, 1.442695
        %v799 = vpow.pop %v798
        %v800 = vmul.f32 %v743, 1.442695
        %v801 = vpow.pop %v800
        %v802 = vmul.f32 %v744, 1.442695
        %v803 = vpow.pop %v802
        %v804 = vmul.f32 %v745, 1.442695
        %v805 = vpow.pop %v804
        %v806 = vmul.f32 %v746, 1.442695
        %v807 = vpow.pop %v806
        %v808 = vmul.f32 %v747, 1.442695
        %v809 = vpow.pop %v808
        %v810 = vmul.f32 %v748, 1.442695
        %v811 = vpow.pop %v810
        %v812 = vmul.f32 %v749, 1.442695
        %v813 = vpow.pop %v812
        %v814 = vadd.f32 %v751, %v753
        %815 = vadd.xlane.f32.xlu0 %v814
        %v816 = vpop.xlane.xlu0 %815
        %v817 = vadd.f32 %v755, %v757
        %818 = vadd.xlane.f32.xlu0 %v817
        %v819 = vpop.xlane.xlu0 %818
        %v820 = vadd.f32 %v759, %v761
        %821 = vadd.xlane.f32.xlu0 %v820
        %v822 = vpop.xlane.xlu0 %821
        %v823 = vadd.f32 %v763, %v765
        %824 = vadd.xlane.f32.xlu0 %v823
        %v825 = vpop.xlane.xlu0 %824
        %v826 = vadd.f32 %v767, %v769
        %827 = vadd.xlane.f32.xlu0 %v826
        %v828 = vpop.xlane.xlu0 %827
        %v829 = vadd.f32 %v771, %v773
        %830 = vadd.xlane.f32.xlu0 %v829
        %v831 = vpop.xlane.xlu0 %830
        %v832 = vadd.f32 %v775, %v777
        %833 = vadd.xlane.f32.xlu0 %v832
        %v834 = vpop.xlane.xlu0 %833
        %v835 = vadd.f32 %v779, %v781
        %836 = vadd.xlane.f32.xlu0 %v835
        %v837 = vpop.xlane.xlu0 %836
        %v838 = vadd.f32 %v783, %v785
        %839 = vadd.xlane.f32.xlu0 %v838
        %v840 = vpop.xlane.xlu0 %839
        %v841 = vadd.f32 %v787, %v789
        %842 = vadd.xlane.f32.xlu0 %v841
        %v843 = vpop.xlane.xlu0 %842
        %v844 = vadd.f32 %v791, %v793
        %845 = vadd.xlane.f32.xlu0 %v844
        %v846 = vpop.xlane.xlu0 %845
        %v847 = vadd.f32 %v795, %v797
        %848 = vadd.xlane.f32.xlu0 %v847
        %v849 = vpop.xlane.xlu0 %848
        %v850 = vadd.f32 %v799, %v801
        %851 = vadd.xlane.f32.xlu0 %v850
        %v852 = vpop.xlane.xlu0 %851
        %v853 = vadd.f32 %v803, %v805
        %854 = vadd.xlane.f32.xlu0 %v853
        %v855 = vpop.xlane.xlu0 %854
        %v856 = vadd.f32 %v807, %v809
        %857 = vadd.xlane.f32.xlu0 %v856
        %v858 = vpop.xlane.xlu0 %857
        %v859 = vadd.f32 %v811, %v813
        %860 = vadd.xlane.f32.xlu0 %v859
        %v861 = vpop.xlane.xlu0 %860
        %v862 = vmax.f32 %v816, 1e-30
        %v863 = vmax.f32 %v819, 1e-30
        %v864 = vmax.f32 %v822, 1e-30
        %v865 = vmax.f32 %v825, 1e-30
        %v866 = vmax.f32 %v828, 1e-30
        %v867 = vmax.f32 %v831, 1e-30
        %v868 = vmax.f32 %v834, 1e-30
        %v869 = vmax.f32 %v837, 1e-30
        %v870 = vmax.f32 %v840, 1e-30
        %v871 = vmax.f32 %v843, 1e-30
        %v872 = vmax.f32 %v846, 1e-30
        %v873 = vmax.f32 %v849, 1e-30
        %v874 = vmax.f32 %v852, 1e-30
        %v875 = vmax.f32 %v855, 1e-30
        %v876 = vmax.f32 %v858, 1e-30
        %v877 = vmax.f32 %v861, 1e-30
        %v878 = vrcp.pop %v862
        %v879 = vrcp.pop %v863
        %v880 = vrcp.pop %v864
        %v881 = vrcp.pop %v865
        %v882 = vrcp.pop %v866
        %v883 = vrcp.pop %v867
        %v884 = vrcp.pop %v868
        %v885 = vrcp.pop %v869
        %v886 = vrcp.pop %v870
        %v887 = vrcp.pop %v871
        %v888 = vrcp.pop %v872
        %v889 = vrcp.pop %v873
        %v890 = vrcp.pop %v874
        %v891 = vrcp.pop %v875
        %v892 = vrcp.pop %v876
        %v893 = vrcp.pop %v877
        %v894 = vmul.f32 %v751, %v878
        %v895 = vmul.f32 %v753, %v878
        %v896 = vmul.f32 %v755, %v879
        %v897 = vmul.f32 %v757, %v879
        %v898 = vmul.f32 %v759, %v880
        %v899 = vmul.f32 %v761, %v880
        %v900 = vmul.f32 %v763, %v881
        %v901 = vmul.f32 %v765, %v881
        %v902 = vmul.f32 %v767, %v882
        %v903 = vmul.f32 %v769, %v882
        %v904 = vmul.f32 %v771, %v883
        %v905 = vmul.f32 %v773, %v883
        %v906 = vmul.f32 %v775, %v884
        %v907 = vmul.f32 %v777, %v884
        %v908 = vmul.f32 %v779, %v885
        %v909 = vmul.f32 %v781, %v885
        %v910 = vmul.f32 %v783, %v886
        %v911 = vmul.f32 %v785, %v886
        %v912 = vmul.f32 %v787, %v887
        %v913 = vmul.f32 %v789, %v887
        %v914 = vmul.f32 %v791, %v888
        %v915 = vmul.f32 %v793, %v888
        %v916 = vmul.f32 %v795, %v889
        %v917 = vmul.f32 %v797, %v889
        %v918 = vmul.f32 %v799, %v890
        %v919 = vmul.f32 %v801, %v890
        %v920 = vmul.f32 %v803, %v891
        %v921 = vmul.f32 %v805, %v891
        %v922 = vmul.f32 %v807, %v892
        %v923 = vmul.f32 %v809, %v892
        %v924 = vmul.f32 %v811, %v893
        %v925 = vmul.f32 %v813, %v893
        %v926 = vadd.f32 %v894, 0.0
        %v927 = vadd.f32 %v895, 0.0
        %v928 = vadd.f32 %v896, 0.0
        %v929 = vadd.f32 %v897, 0.0
        %v930 = vadd.f32 %v898, 0.0
        %v931 = vadd.f32 %v899, 0.0
        %v932 = vadd.f32 %v900, 0.0
        %v933 = vadd.f32 %v901, 0.0
        %v934 = vadd.f32 %v902, 0.0
        %v935 = vadd.f32 %v903, 0.0
        %v936 = vadd.f32 %v904, 0.0
        %v937 = vadd.f32 %v905, 0.0
        %v938 = vadd.f32 %v906, 0.0
        %v939 = vadd.f32 %v907, 0.0
        %v940 = vadd.f32 %v908, 0.0
        %v941 = vadd.f32 %v909, 0.0
        %v942 = vadd.f32 %v910, 0.0
        %v943 = vadd.f32 %v911, 0.0
        %v944 = vadd.f32 %v912, 0.0
        %v945 = vadd.f32 %v913, 0.0
        %v946 = vadd.f32 %v914, 0.0
        %v947 = vadd.f32 %v915, 0.0
        %v948 = vadd.f32 %v916, 0.0
        %v949 = vadd.f32 %v917, 0.0
        %v950 = vadd.f32 %v918, 0.0
        %v951 = vadd.f32 %v919, 0.0
        %v952 = vadd.f32 %v920, 0.0
        %v953 = vadd.f32 %v921, 0.0
        %v954 = vadd.f32 %v922, 0.0
        %v955 = vadd.f32 %v923, 0.0
        %v956 = vadd.f32 %v924, 0.0
        %v957 = vadd.f32 %v925, 0.0
        %958 = vset.pattern.permute.xlu0 1
        %959 = vperm.xlu0 %958, %v439
        %v960 = vpop.permute.xlu0 %959
        %962 = vset.pattern.permute.xlu0 1
        %963 = vperm.xlu0 %962, %v440
        %v964 = vpop.permute.xlu0 %963
        %966 = vset.pattern.permute.xlu0 1
        %967 = vperm.xlu0 %966, %v441
        %v968 = vpop.permute.xlu0 %967
        %970 = vset.pattern.permute.xlu0 1
        %971 = vperm.xlu0 %970, %v442
        %v972 = vpop.permute.xlu0 %971
        %974 = vset.pattern.permute.xlu0 1
        %975 = vperm.xlu0 %974, %v443
        %v976 = vpop.permute.xlu0 %975
        %978 = vset.pattern.permute.xlu0 1
        %979 = vperm.xlu0 %978, %v444
        %v980 = vpop.permute.xlu0 %979
        %982 = vset.pattern.permute.xlu0 1
        %983 = vperm.xlu0 %982, %v445
        %v984 = vpop.permute.xlu0 %983
        %986 = vset.pattern.permute.xlu0 1
        %987 = vperm.xlu0 %986, %v446
        %v988 = vpop.permute.xlu0 %987
        %990 = vset.pattern.permute.xlu0 1
        %991 = vperm.xlu0 %990, %v447
        %v992 = vpop.permute.xlu0 %991
        %994 = vset.pattern.permute.xlu0 1
        %995 = vperm.xlu0 %994, %v448
        %v996 = vpop.permute.xlu0 %995
        %998 = vset.pattern.permute.xlu0 1
        %999 = vperm.xlu0 %998, %v449
        %v1000 = vpop.permute.xlu0 %999
        %1002 = vset.pattern.permute.xlu0 1
        %1003 = vperm.xlu0 %1002, %v450
        %v1004 = vpop.permute.xlu0 %1003
        %1006 = vset.pattern.permute.xlu0 1
        %1007 = vperm.xlu0 %1006, %v451
        %v1008 = vpop.permute.xlu0 %1007
        %1010 = vset.pattern.permute.xlu0 1
        %1011 = vperm.xlu0 %1010, %v452
        %v1012 = vpop.permute.xlu0 %1011
        %1014 = vset.pattern.permute.xlu0 1
        %1015 = vperm.xlu0 %1014, %v453
        %v1016 = vpop.permute.xlu0 %1015
        %1018 = vset.pattern.permute.xlu0 1
        %1019 = vperm.xlu0 %1018, %v454
        %v1020 = vpop.permute.xlu0 %1019
        %v1022 = vperm.slane %v438, 1
        %v1023 = vperm.slane %v438, 5
        %v1026 = vperm.slane %v1022, 1
        %v1027 = vperm.slane %v1023, 1
        %v1028 = vadd.f32 %v960, %v1026
        %v1029 = vadd.f32 %v960, %v1027
        %v1030 = vadd.f32 %v964, %v1026
        %v1031 = vadd.f32 %v964, %v1027
        %v1032 = vadd.f32 %v968, %v1026
        %v1033 = vadd.f32 %v968, %v1027
        %v1034 = vadd.f32 %v972, %v1026
        %v1035 = vadd.f32 %v972, %v1027
        %v1036 = vadd.f32 %v976, %v1026
        %v1037 = vadd.f32 %v976, %v1027
        %v1038 = vadd.f32 %v980, %v1026
        %v1039 = vadd.f32 %v980, %v1027
        %v1040 = vadd.f32 %v984, %v1026
        %v1041 = vadd.f32 %v984, %v1027
        %v1042 = vadd.f32 %v988, %v1026
        %v1043 = vadd.f32 %v988, %v1027
        %v1044 = vadd.f32 %v992, %v1026
        %v1045 = vadd.f32 %v992, %v1027
        %v1046 = vadd.f32 %v996, %v1026
        %v1047 = vadd.f32 %v996, %v1027
        %v1048 = vadd.f32 %v1000, %v1026
        %v1049 = vadd.f32 %v1000, %v1027
        %v1050 = vadd.f32 %v1004, %v1026
        %v1051 = vadd.f32 %v1004, %v1027
        %v1052 = vadd.f32 %v1008, %v1026
        %v1053 = vadd.f32 %v1008, %v1027
        %v1054 = vadd.f32 %v1012, %v1026
        %v1055 = vadd.f32 %v1012, %v1027
        %v1056 = vadd.f32 %v1016, %v1026
        %v1057 = vadd.f32 %v1016, %v1027
        %v1058 = vadd.f32 %v1020, %v1026
        %v1059 = vadd.f32 %v1020, %v1027
        %v1060 = vmul.f32 %v1028, 0.2
        %v1061 = vmul.f32 %v1029, 0.2
        %v1062 = vmul.f32 %v1030, 0.2
        %v1063 = vmul.f32 %v1031, 0.2
        %v1064 = vmul.f32 %v1032, 0.2
        %v1065 = vmul.f32 %v1033, 0.2
        %v1066 = vmul.f32 %v1034, 0.2
        %v1067 = vmul.f32 %v1035, 0.2
        %v1068 = vmul.f32 %v1036, 0.2
        %v1069 = vmul.f32 %v1037, 0.2
        %v1070 = vmul.f32 %v1038, 0.2
        %v1071 = vmul.f32 %v1039, 0.2
        %v1072 = vmul.f32 %v1040, 0.2
        %v1073 = vmul.f32 %v1041, 0.2
        %v1074 = vmul.f32 %v1042, 0.2
        %v1075 = vmul.f32 %v1043, 0.2
        %v1076 = vmul.f32 %v1044, 0.2
        %v1077 = vmul.f32 %v1045, 0.2
        %v1078 = vmul.f32 %v1046, 0.2
        %v1079 = vmul.f32 %v1047, 0.2
        %v1080 = vmul.f32 %v1048, 0.2
        %v1081 = vmul.f32 %v1049, 0.2
        %v1082 = vmul.f32 %v1050, 0.2
        %v1083 = vmul.f32 %v1051, 0.2
        %v1084 = vmul.f32 %v1052, 0.2
        %v1085 = vmul.f32 %v1053, 0.2
        %v1086 = vmul.f32 %v1054, 0.2
        %v1087 = vmul.f32 %v1055, 0.2
        %v1088 = vmul.f32 %v1056, 0.2
        %v1089 = vmul.f32 %v1057, 0.2
        %v1090 = vmul.f32 %v1058, 0.2
        %v1091 = vmul.f32 %v1059, 0.2
        %v1092 = vmax.f32 %v1028, %v1060
        %v1093 = vmax.f32 %v1029, %v1061
        %v1094 = vmax.f32 %v1030, %v1062
        %v1095 = vmax.f32 %v1031, %v1063
        %v1096 = vmax.f32 %v1032, %v1064
        %v1097 = vmax.f32 %v1033, %v1065
        %v1098 = vmax.f32 %v1034, %v1066
        %v1099 = vmax.f32 %v1035, %v1067
        %v1100 = vmax.f32 %v1036, %v1068
        %v1101 = vmax.f32 %v1037, %v1069
        %v1102 = vmax.f32 %v1038, %v1070
        %v1103 = vmax.f32 %v1039, %v1071
        %v1104 = vmax.f32 %v1040, %v1072
        %v1105 = vmax.f32 %v1041, %v1073
        %v1106 = vmax.f32 %v1042, %v1074
        %v1107 = vmax.f32 %v1043, %v1075
        %v1108 = vmax.f32 %v1044, %v1076
        %v1109 = vmax.f32 %v1045, %v1077
        %v1110 = vmax.f32 %v1046, %v1078
        %v1111 = vmax.f32 %v1047, %v1079
        %v1112 = vmax.f32 %v1048, %v1080
        %v1113 = vmax.f32 %v1049, %v1081
        %v1114 = vmax.f32 %v1050, %v1082
        %v1115 = vmax.f32 %v1051, %v1083
        %v1116 = vmax.f32 %v1052, %v1084
        %v1117 = vmax.f32 %v1053, %v1085
        %v1118 = vmax.f32 %v1054, %v1086
        %v1119 = vmax.f32 %v1055, %v1087
        %v1120 = vmax.f32 %v1056, %v1088
        %v1121 = vmax.f32 %v1057, %v1089
        %v1122 = vmax.f32 %v1058, %v1090
        %v1123 = vmax.f32 %v1059, %v1091
        %v1124 = vsel %vm334, %v1092, -1e+30
        %v1125 = vsel %vm335, %v1093, -1e+30
        %v1126 = vsel %vm336, %v1094, -1e+30
        %v1127 = vsel %vm337, %v1095, -1e+30
        %v1128 = vsel %vm338, %v1096, -1e+30
        %v1129 = vsel %vm339, %v1097, -1e+30
        %v1130 = vsel %vm340, %v1098, -1e+30
        %v1131 = vsel %vm341, %v1099, -1e+30
        %v1132 = vsel %vm342, %v1100, -1e+30
        %v1133 = vsel %vm343, %v1101, -1e+30
        %v1134 = vsel %vm344, %v1102, -1e+30
        %v1135 = vsel %vm345, %v1103, -1e+30
        %v1136 = vsel %vm346, %v1104, -1e+30
        %v1137 = vsel %vm347, %v1105, -1e+30
        %v1138 = vsel %vm348, %v1106, -1e+30
        %v1139 = vsel %vm349, %v1107, -1e+30
        %v1140 = vsel %vm350, %v1108, -1e+30
        %v1141 = vsel %vm351, %v1109, -1e+30
        %v1142 = vsel %vm352, %v1110, -1e+30
        %v1143 = vsel %vm353, %v1111, -1e+30
        %v1144 = vsel %vm354, %v1112, -1e+30
        %v1145 = vsel %vm355, %v1113, -1e+30
        %v1146 = vsel %vm356, %v1114, -1e+30
        %v1147 = vsel %vm357, %v1115, -1e+30
        %v1148 = vsel %vm358, %v1116, -1e+30
        %v1149 = vsel %vm359, %v1117, -1e+30
        %v1150 = vsel %vm360, %v1118, -1e+30
        %v1151 = vsel %vm361, %v1119, -1e+30
        %v1152 = vsel %vm362, %v1120, -1e+30
        %v1153 = vsel %vm363, %v1121, -1e+30
        %v1154 = vsel %vm364, %v1122, -1e+30
        %v1155 = vsel %vm365, %v1123, -1e+30
        %v1156 = vmax.f32 %v1124, %v1125
        %1157 = vmax.xlane.f32.xlu0 %v1156
        %v1158 = vpop.xlane.xlu0 %1157
        %v1159 = vmax.f32 %v1126, %v1127
        %1160 = vmax.xlane.f32.xlu0 %v1159
        %v1161 = vpop.xlane.xlu0 %1160
        %v1162 = vmax.f32 %v1128, %v1129
        %1163 = vmax.xlane.f32.xlu0 %v1162
        %v1164 = vpop.xlane.xlu0 %1163
        %v1165 = vmax.f32 %v1130, %v1131
        %1166 = vmax.xlane.f32.xlu0 %v1165
        %v1167 = vpop.xlane.xlu0 %1166
        %v1168 = vmax.f32 %v1132, %v1133
        %1169 = vmax.xlane.f32.xlu0 %v1168
        %v1170 = vpop.xlane.xlu0 %1169
        %v1171 = vmax.f32 %v1134, %v1135
        %1172 = vmax.xlane.f32.xlu0 %v1171
        %v1173 = vpop.xlane.xlu0 %1172
        %v1174 = vmax.f32 %v1136, %v1137
        %1175 = vmax.xlane.f32.xlu0 %v1174
        %v1176 = vpop.xlane.xlu0 %1175
        %v1177 = vmax.f32 %v1138, %v1139
        %1178 = vmax.xlane.f32.xlu0 %v1177
        %v1179 = vpop.xlane.xlu0 %1178
        %v1180 = vmax.f32 %v1140, %v1141
        %1181 = vmax.xlane.f32.xlu0 %v1180
        %v1182 = vpop.xlane.xlu0 %1181
        %v1183 = vmax.f32 %v1142, %v1143
        %1184 = vmax.xlane.f32.xlu0 %v1183
        %v1185 = vpop.xlane.xlu0 %1184
        %v1186 = vmax.f32 %v1144, %v1145
        %1187 = vmax.xlane.f32.xlu0 %v1186
        %v1188 = vpop.xlane.xlu0 %1187
        %v1189 = vmax.f32 %v1146, %v1147
        %1190 = vmax.xlane.f32.xlu0 %v1189
        %v1191 = vpop.xlane.xlu0 %1190
        %v1192 = vmax.f32 %v1148, %v1149
        %1193 = vmax.xlane.f32.xlu0 %v1192
        %v1194 = vpop.xlane.xlu0 %1193
        %v1195 = vmax.f32 %v1150, %v1151
        %1196 = vmax.xlane.f32.xlu0 %v1195
        %v1197 = vpop.xlane.xlu0 %1196
        %v1198 = vmax.f32 %v1152, %v1153
        %1199 = vmax.xlane.f32.xlu0 %v1198
        %v1200 = vpop.xlane.xlu0 %1199
        %v1201 = vmax.f32 %v1154, %v1155
        %1202 = vmax.xlane.f32.xlu0 %v1201
        %v1203 = vpop.xlane.xlu0 %1202
        %v1204 = vsub.f32 %v1124, %v1158
        %v1205 = vsub.f32 %v1125, %v1158
        %v1206 = vsub.f32 %v1126, %v1161
        %v1207 = vsub.f32 %v1127, %v1161
        %v1208 = vsub.f32 %v1128, %v1164
        %v1209 = vsub.f32 %v1129, %v1164
        %v1210 = vsub.f32 %v1130, %v1167
        %v1211 = vsub.f32 %v1131, %v1167
        %v1212 = vsub.f32 %v1132, %v1170
        %v1213 = vsub.f32 %v1133, %v1170
        %v1214 = vsub.f32 %v1134, %v1173
        %v1215 = vsub.f32 %v1135, %v1173
        %v1216 = vsub.f32 %v1136, %v1176
        %v1217 = vsub.f32 %v1137, %v1176
        %v1218 = vsub.f32 %v1138, %v1179
        %v1219 = vsub.f32 %v1139, %v1179
        %v1220 = vsub.f32 %v1140, %v1182
        %v1221 = vsub.f32 %v1141, %v1182
        %v1222 = vsub.f32 %v1142, %v1185
        %v1223 = vsub.f32 %v1143, %v1185
        %v1224 = vsub.f32 %v1144, %v1188
        %v1225 = vsub.f32 %v1145, %v1188
        %v1226 = vsub.f32 %v1146, %v1191
        %v1227 = vsub.f32 %v1147, %v1191
        %v1228 = vsub.f32 %v1148, %v1194
        %v1229 = vsub.f32 %v1149, %v1194
        %v1230 = vsub.f32 %v1150, %v1197
        %v1231 = vsub.f32 %v1151, %v1197
        %v1232 = vsub.f32 %v1152, %v1200
        %v1233 = vsub.f32 %v1153, %v1200
        %v1234 = vsub.f32 %v1154, %v1203
        %v1235 = vsub.f32 %v1155, %v1203
        %v1236 = vmul.f32 %v1204, 1.442695
        %v1237 = vpow.pop %v1236
        %v1238 = vmul.f32 %v1205, 1.442695
        %v1239 = vpow.pop %v1238
        %v1240 = vmul.f32 %v1206, 1.442695
        %v1241 = vpow.pop %v1240
        %v1242 = vmul.f32 %v1207, 1.442695
        %v1243 = vpow.pop %v1242
        %v1244 = vmul.f32 %v1208, 1.442695
        %v1245 = vpow.pop %v1244
        %v1246 = vmul.f32 %v1209, 1.442695
        %v1247 = vpow.pop %v1246
        %v1248 = vmul.f32 %v1210, 1.442695
        %v1249 = vpow.pop %v1248
        %v1250 = vmul.f32 %v1211, 1.442695
        %v1251 = vpow.pop %v1250
        %v1252 = vmul.f32 %v1212, 1.442695
        %v1253 = vpow.pop %v1252
        %v1254 = vmul.f32 %v1213, 1.442695
        %v1255 = vpow.pop %v1254
        %v1256 = vmul.f32 %v1214, 1.442695
        %v1257 = vpow.pop %v1256
        %v1258 = vmul.f32 %v1215, 1.442695
        %v1259 = vpow.pop %v1258
        %v1260 = vmul.f32 %v1216, 1.442695
        %v1261 = vpow.pop %v1260
        %v1262 = vmul.f32 %v1217, 1.442695
        %v1263 = vpow.pop %v1262
        %v1264 = vmul.f32 %v1218, 1.442695
        %v1265 = vpow.pop %v1264
        %v1266 = vmul.f32 %v1219, 1.442695
        %v1267 = vpow.pop %v1266
        %v1268 = vmul.f32 %v1220, 1.442695
        %v1269 = vpow.pop %v1268
        %v1270 = vmul.f32 %v1221, 1.442695
        %v1271 = vpow.pop %v1270
        %v1272 = vmul.f32 %v1222, 1.442695
        %v1273 = vpow.pop %v1272
        %v1274 = vmul.f32 %v1223, 1.442695
        %v1275 = vpow.pop %v1274
        %v1276 = vmul.f32 %v1224, 1.442695
        %v1277 = vpow.pop %v1276
        %v1278 = vmul.f32 %v1225, 1.442695
        %v1279 = vpow.pop %v1278
        %v1280 = vmul.f32 %v1226, 1.442695
        %v1281 = vpow.pop %v1280
        %v1282 = vmul.f32 %v1227, 1.442695
        %v1283 = vpow.pop %v1282
        %v1284 = vmul.f32 %v1228, 1.442695
        %v1285 = vpow.pop %v1284
        %v1286 = vmul.f32 %v1229, 1.442695
        %v1287 = vpow.pop %v1286
        %v1288 = vmul.f32 %v1230, 1.442695
        %v1289 = vpow.pop %v1288
        %v1290 = vmul.f32 %v1231, 1.442695
        %v1291 = vpow.pop %v1290
        %v1292 = vmul.f32 %v1232, 1.442695
        %v1293 = vpow.pop %v1292
        %v1294 = vmul.f32 %v1233, 1.442695
        %v1295 = vpow.pop %v1294
        %v1296 = vmul.f32 %v1234, 1.442695
        %v1297 = vpow.pop %v1296
        %v1298 = vmul.f32 %v1235, 1.442695
        %v1299 = vpow.pop %v1298
        %v1300 = vadd.f32 %v1237, %v1239
        %1301 = vadd.xlane.f32.xlu0 %v1300
        %v1302 = vpop.xlane.xlu0 %1301
        %v1303 = vadd.f32 %v1241, %v1243
        %1304 = vadd.xlane.f32.xlu0 %v1303
        %v1305 = vpop.xlane.xlu0 %1304
        %v1306 = vadd.f32 %v1245, %v1247
        %1307 = vadd.xlane.f32.xlu0 %v1306
        %v1308 = vpop.xlane.xlu0 %1307
        %v1309 = vadd.f32 %v1249, %v1251
        %1310 = vadd.xlane.f32.xlu0 %v1309
        %v1311 = vpop.xlane.xlu0 %1310
        %v1312 = vadd.f32 %v1253, %v1255
        %1313 = vadd.xlane.f32.xlu0 %v1312
        %v1314 = vpop.xlane.xlu0 %1313
        %v1315 = vadd.f32 %v1257, %v1259
        %1316 = vadd.xlane.f32.xlu0 %v1315
        %v1317 = vpop.xlane.xlu0 %1316
        %v1318 = vadd.f32 %v1261, %v1263
        %1319 = vadd.xlane.f32.xlu0 %v1318
        %v1320 = vpop.xlane.xlu0 %1319
        %v1321 = vadd.f32 %v1265, %v1267
        %1322 = vadd.xlane.f32.xlu0 %v1321
        %v1323 = vpop.xlane.xlu0 %1322
        %v1324 = vadd.f32 %v1269, %v1271
        %1325 = vadd.xlane.f32.xlu0 %v1324
        %v1326 = vpop.xlane.xlu0 %1325
        %v1327 = vadd.f32 %v1273, %v1275
        %1328 = vadd.xlane.f32.xlu0 %v1327
        %v1329 = vpop.xlane.xlu0 %1328
        %v1330 = vadd.f32 %v1277, %v1279
        %1331 = vadd.xlane.f32.xlu0 %v1330
        %v1332 = vpop.xlane.xlu0 %1331
        %v1333 = vadd.f32 %v1281, %v1283
        %1334 = vadd.xlane.f32.xlu0 %v1333
        %v1335 = vpop.xlane.xlu0 %1334
        %v1336 = vadd.f32 %v1285, %v1287
        %1337 = vadd.xlane.f32.xlu0 %v1336
        %v1338 = vpop.xlane.xlu0 %1337
        %v1339 = vadd.f32 %v1289, %v1291
        %1340 = vadd.xlane.f32.xlu0 %v1339
        %v1341 = vpop.xlane.xlu0 %1340
        %v1342 = vadd.f32 %v1293, %v1295
        %1343 = vadd.xlane.f32.xlu0 %v1342
        %v1344 = vpop.xlane.xlu0 %1343
        %v1345 = vadd.f32 %v1297, %v1299
        %1346 = vadd.xlane.f32.xlu0 %v1345
        %v1347 = vpop.xlane.xlu0 %1346
        %v1348 = vmax.f32 %v1302, 1e-30
        %v1349 = vmax.f32 %v1305, 1e-30
        %v1350 = vmax.f32 %v1308, 1e-30
        %v1351 = vmax.f32 %v1311, 1e-30
        %v1352 = vmax.f32 %v1314, 1e-30
        %v1353 = vmax.f32 %v1317, 1e-30
        %v1354 = vmax.f32 %v1320, 1e-30
        %v1355 = vmax.f32 %v1323, 1e-30
        %v1356 = vmax.f32 %v1326, 1e-30
        %v1357 = vmax.f32 %v1329, 1e-30
        %v1358 = vmax.f32 %v1332, 1e-30
        %v1359 = vmax.f32 %v1335, 1e-30
        %v1360 = vmax.f32 %v1338, 1e-30
        %v1361 = vmax.f32 %v1341, 1e-30
        %v1362 = vmax.f32 %v1344, 1e-30
        %v1363 = vmax.f32 %v1347, 1e-30
        %v1364 = vrcp.pop %v1348
        %v1365 = vrcp.pop %v1349
        %v1366 = vrcp.pop %v1350
        %v1367 = vrcp.pop %v1351
        %v1368 = vrcp.pop %v1352
        %v1369 = vrcp.pop %v1353
        %v1370 = vrcp.pop %v1354
        %v1371 = vrcp.pop %v1355
        %v1372 = vrcp.pop %v1356
        %v1373 = vrcp.pop %v1357
        %v1374 = vrcp.pop %v1358
        %v1375 = vrcp.pop %v1359
        %v1376 = vrcp.pop %v1360
        %v1377 = vrcp.pop %v1361
        %v1378 = vrcp.pop %v1362
        %v1379 = vrcp.pop %v1363
        %v1380 = vmul.f32 %v1237, %v1364
        %v1381 = vmul.f32 %v1239, %v1364
        %v1382 = vmul.f32 %v1241, %v1365
        %v1383 = vmul.f32 %v1243, %v1365
        %v1384 = vmul.f32 %v1245, %v1366
        %v1385 = vmul.f32 %v1247, %v1366
        %v1386 = vmul.f32 %v1249, %v1367
        %v1387 = vmul.f32 %v1251, %v1367
        %v1388 = vmul.f32 %v1253, %v1368
        %v1389 = vmul.f32 %v1255, %v1368
        %v1390 = vmul.f32 %v1257, %v1369
        %v1391 = vmul.f32 %v1259, %v1369
        %v1392 = vmul.f32 %v1261, %v1370
        %v1393 = vmul.f32 %v1263, %v1370
        %v1394 = vmul.f32 %v1265, %v1371
        %v1395 = vmul.f32 %v1267, %v1371
        %v1396 = vmul.f32 %v1269, %v1372
        %v1397 = vmul.f32 %v1271, %v1372
        %v1398 = vmul.f32 %v1273, %v1373
        %v1399 = vmul.f32 %v1275, %v1373
        %v1400 = vmul.f32 %v1277, %v1374
        %v1401 = vmul.f32 %v1279, %v1374
        %v1402 = vmul.f32 %v1281, %v1375
        %v1403 = vmul.f32 %v1283, %v1375
        %v1404 = vmul.f32 %v1285, %v1376
        %v1405 = vmul.f32 %v1287, %v1376
        %v1406 = vmul.f32 %v1289, %v1377
        %v1407 = vmul.f32 %v1291, %v1377
        %v1408 = vmul.f32 %v1293, %v1378
        %v1409 = vmul.f32 %v1295, %v1378
        %v1410 = vmul.f32 %v1297, %v1379
        %v1411 = vmul.f32 %v1299, %v1379
        %v1412 = vadd.f32 %v926, %v1380
        %v1413 = vadd.f32 %v927, %v1381
        %v1414 = vadd.f32 %v928, %v1382
        %v1415 = vadd.f32 %v929, %v1383
        %v1416 = vadd.f32 %v930, %v1384
        %v1417 = vadd.f32 %v931, %v1385
        %v1418 = vadd.f32 %v932, %v1386
        %v1419 = vadd.f32 %v933, %v1387
        %v1420 = vadd.f32 %v934, %v1388
        %v1421 = vadd.f32 %v935, %v1389
        %v1422 = vadd.f32 %v936, %v1390
        %v1423 = vadd.f32 %v937, %v1391
        %v1424 = vadd.f32 %v938, %v1392
        %v1425 = vadd.f32 %v939, %v1393
        %v1426 = vadd.f32 %v940, %v1394
        %v1427 = vadd.f32 %v941, %v1395
        %v1428 = vadd.f32 %v942, %v1396
        %v1429 = vadd.f32 %v943, %v1397
        %v1430 = vadd.f32 %v944, %v1398
        %v1431 = vadd.f32 %v945, %v1399
        %v1432 = vadd.f32 %v946, %v1400
        %v1433 = vadd.f32 %v947, %v1401
        %v1434 = vadd.f32 %v948, %v1402
        %v1435 = vadd.f32 %v949, %v1403
        %v1436 = vadd.f32 %v950, %v1404
        %v1437 = vadd.f32 %v951, %v1405
        %v1438 = vadd.f32 %v952, %v1406
        %v1439 = vadd.f32 %v953, %v1407
        %v1440 = vadd.f32 %v954, %v1408
        %v1441 = vadd.f32 %v955, %v1409
        %v1442 = vadd.f32 %v956, %v1410
        %v1443 = vadd.f32 %v957, %v1411
        %1444 = vset.pattern.permute.xlu0 2
        %1445 = vperm.xlu0 %1444, %v439
        %v1446 = vpop.permute.xlu0 %1445
        %1448 = vset.pattern.permute.xlu0 2
        %1449 = vperm.xlu0 %1448, %v440
        %v1450 = vpop.permute.xlu0 %1449
        %1452 = vset.pattern.permute.xlu0 2
        %1453 = vperm.xlu0 %1452, %v441
        %v1454 = vpop.permute.xlu0 %1453
        %1456 = vset.pattern.permute.xlu0 2
        %1457 = vperm.xlu0 %1456, %v442
        %v1458 = vpop.permute.xlu0 %1457
        %1460 = vset.pattern.permute.xlu0 2
        %1461 = vperm.xlu0 %1460, %v443
        %v1462 = vpop.permute.xlu0 %1461
        %1464 = vset.pattern.permute.xlu0 2
        %1465 = vperm.xlu0 %1464, %v444
        %v1466 = vpop.permute.xlu0 %1465
        %1468 = vset.pattern.permute.xlu0 2
        %1469 = vperm.xlu0 %1468, %v445
        %v1470 = vpop.permute.xlu0 %1469
        %1472 = vset.pattern.permute.xlu0 2
        %1473 = vperm.xlu0 %1472, %v446
        %v1474 = vpop.permute.xlu0 %1473
        %1476 = vset.pattern.permute.xlu0 2
        %1477 = vperm.xlu0 %1476, %v447
        %v1478 = vpop.permute.xlu0 %1477
        %1480 = vset.pattern.permute.xlu0 2
        %1481 = vperm.xlu0 %1480, %v448
        %v1482 = vpop.permute.xlu0 %1481
        %1484 = vset.pattern.permute.xlu0 2
        %1485 = vperm.xlu0 %1484, %v449
        %v1486 = vpop.permute.xlu0 %1485
        %1488 = vset.pattern.permute.xlu0 2
        %1489 = vperm.xlu0 %1488, %v450
        %v1490 = vpop.permute.xlu0 %1489
        %1492 = vset.pattern.permute.xlu0 2
        %1493 = vperm.xlu0 %1492, %v451
        %v1494 = vpop.permute.xlu0 %1493
        %1496 = vset.pattern.permute.xlu0 2
        %1497 = vperm.xlu0 %1496, %v452
        %v1498 = vpop.permute.xlu0 %1497
        %1500 = vset.pattern.permute.xlu0 2
        %1501 = vperm.xlu0 %1500, %v453
        %v1502 = vpop.permute.xlu0 %1501
        %1504 = vset.pattern.permute.xlu0 2
        %1505 = vperm.xlu0 %1504, %v454
        %v1506 = vpop.permute.xlu0 %1505
        %v1508 = vperm.slane %v438, 2
        %v1509 = vperm.slane %v438, 6
        %v1512 = vperm.slane %v1508, 2
        %v1513 = vperm.slane %v1509, 2
        %v1514 = vadd.f32 %v1446, %v1512
        %v1515 = vadd.f32 %v1446, %v1513
        %v1516 = vadd.f32 %v1450, %v1512
        %v1517 = vadd.f32 %v1450, %v1513
        %v1518 = vadd.f32 %v1454, %v1512
        %v1519 = vadd.f32 %v1454, %v1513
        %v1520 = vadd.f32 %v1458, %v1512
        %v1521 = vadd.f32 %v1458, %v1513
        %v1522 = vadd.f32 %v1462, %v1512
        %v1523 = vadd.f32 %v1462, %v1513
        %v1524 = vadd.f32 %v1466, %v1512
        %v1525 = vadd.f32 %v1466, %v1513
        %v1526 = vadd.f32 %v1470, %v1512
        %v1527 = vadd.f32 %v1470, %v1513
        %v1528 = vadd.f32 %v1474, %v1512
        %v1529 = vadd.f32 %v1474, %v1513
        %v1530 = vadd.f32 %v1478, %v1512
        %v1531 = vadd.f32 %v1478, %v1513
        %v1532 = vadd.f32 %v1482, %v1512
        %v1533 = vadd.f32 %v1482, %v1513
        %v1534 = vadd.f32 %v1486, %v1512
        %v1535 = vadd.f32 %v1486, %v1513
        %v1536 = vadd.f32 %v1490, %v1512
        %v1537 = vadd.f32 %v1490, %v1513
        %v1538 = vadd.f32 %v1494, %v1512
        %v1539 = vadd.f32 %v1494, %v1513
        %v1540 = vadd.f32 %v1498, %v1512
        %v1541 = vadd.f32 %v1498, %v1513
        %v1542 = vadd.f32 %v1502, %v1512
        %v1543 = vadd.f32 %v1502, %v1513
        %v1544 = vadd.f32 %v1506, %v1512
        %v1545 = vadd.f32 %v1506, %v1513
        %v1546 = vmul.f32 %v1514, 0.2
        %v1547 = vmul.f32 %v1515, 0.2
        %v1548 = vmul.f32 %v1516, 0.2
        %v1549 = vmul.f32 %v1517, 0.2
        %v1550 = vmul.f32 %v1518, 0.2
        %v1551 = vmul.f32 %v1519, 0.2
        %v1552 = vmul.f32 %v1520, 0.2
        %v1553 = vmul.f32 %v1521, 0.2
        %v1554 = vmul.f32 %v1522, 0.2
        %v1555 = vmul.f32 %v1523, 0.2
        %v1556 = vmul.f32 %v1524, 0.2
        %v1557 = vmul.f32 %v1525, 0.2
        %v1558 = vmul.f32 %v1526, 0.2
        %v1559 = vmul.f32 %v1527, 0.2
        %v1560 = vmul.f32 %v1528, 0.2
        %v1561 = vmul.f32 %v1529, 0.2
        %v1562 = vmul.f32 %v1530, 0.2
        %v1563 = vmul.f32 %v1531, 0.2
        %v1564 = vmul.f32 %v1532, 0.2
        %v1565 = vmul.f32 %v1533, 0.2
        %v1566 = vmul.f32 %v1534, 0.2
        %v1567 = vmul.f32 %v1535, 0.2
        %v1568 = vmul.f32 %v1536, 0.2
        %v1569 = vmul.f32 %v1537, 0.2
        %v1570 = vmul.f32 %v1538, 0.2
        %v1571 = vmul.f32 %v1539, 0.2
        %v1572 = vmul.f32 %v1540, 0.2
        %v1573 = vmul.f32 %v1541, 0.2
        %v1574 = vmul.f32 %v1542, 0.2
        %v1575 = vmul.f32 %v1543, 0.2
        %v1576 = vmul.f32 %v1544, 0.2
        %v1577 = vmul.f32 %v1545, 0.2
        %v1578 = vmax.f32 %v1514, %v1546
        %v1579 = vmax.f32 %v1515, %v1547
        %v1580 = vmax.f32 %v1516, %v1548
        %v1581 = vmax.f32 %v1517, %v1549
        %v1582 = vmax.f32 %v1518, %v1550
        %v1583 = vmax.f32 %v1519, %v1551
        %v1584 = vmax.f32 %v1520, %v1552
        %v1585 = vmax.f32 %v1521, %v1553
        %v1586 = vmax.f32 %v1522, %v1554
        %v1587 = vmax.f32 %v1523, %v1555
        %v1588 = vmax.f32 %v1524, %v1556
        %v1589 = vmax.f32 %v1525, %v1557
        %v1590 = vmax.f32 %v1526, %v1558
        %v1591 = vmax.f32 %v1527, %v1559
        %v1592 = vmax.f32 %v1528, %v1560
        %v1593 = vmax.f32 %v1529, %v1561
        %v1594 = vmax.f32 %v1530, %v1562
        %v1595 = vmax.f32 %v1531, %v1563
        %v1596 = vmax.f32 %v1532, %v1564
        %v1597 = vmax.f32 %v1533, %v1565
        %v1598 = vmax.f32 %v1534, %v1566
        %v1599 = vmax.f32 %v1535, %v1567
        %v1600 = vmax.f32 %v1536, %v1568
        %v1601 = vmax.f32 %v1537, %v1569
        %v1602 = vmax.f32 %v1538, %v1570
        %v1603 = vmax.f32 %v1539, %v1571
        %v1604 = vmax.f32 %v1540, %v1572
        %v1605 = vmax.f32 %v1541, %v1573
        %v1606 = vmax.f32 %v1542, %v1574
        %v1607 = vmax.f32 %v1543, %v1575
        %v1608 = vmax.f32 %v1544, %v1576
        %v1609 = vmax.f32 %v1545, %v1577
        %v1610 = vsel %vm334, %v1578, -1e+30
        %v1611 = vsel %vm335, %v1579, -1e+30
        %v1612 = vsel %vm336, %v1580, -1e+30
        %v1613 = vsel %vm337, %v1581, -1e+30
        %v1614 = vsel %vm338, %v1582, -1e+30
        %v1615 = vsel %vm339, %v1583, -1e+30
        %v1616 = vsel %vm340, %v1584, -1e+30
        %v1617 = vsel %vm341, %v1585, -1e+30
        %v1618 = vsel %vm342, %v1586, -1e+30
        %v1619 = vsel %vm343, %v1587, -1e+30
        %v1620 = vsel %vm344, %v1588, -1e+30
        %v1621 = vsel %vm345, %v1589, -1e+30
        %v1622 = vsel %vm346, %v1590, -1e+30
        %v1623 = vsel %vm347, %v1591, -1e+30
        %v1624 = vsel %vm348, %v1592, -1e+30
        %v1625 = vsel %vm349, %v1593, -1e+30
        %v1626 = vsel %vm350, %v1594, -1e+30
        %v1627 = vsel %vm351, %v1595, -1e+30
        %v1628 = vsel %vm352, %v1596, -1e+30
        %v1629 = vsel %vm353, %v1597, -1e+30
        %v1630 = vsel %vm354, %v1598, -1e+30
        %v1631 = vsel %vm355, %v1599, -1e+30
        %v1632 = vsel %vm356, %v1600, -1e+30
        %v1633 = vsel %vm357, %v1601, -1e+30
        %v1634 = vsel %vm358, %v1602, -1e+30
        %v1635 = vsel %vm359, %v1603, -1e+30
        %v1636 = vsel %vm360, %v1604, -1e+30
        %v1637 = vsel %vm361, %v1605, -1e+30
        %v1638 = vsel %vm362, %v1606, -1e+30
        %v1639 = vsel %vm363, %v1607, -1e+30
        %v1640 = vsel %vm364, %v1608, -1e+30
        %v1641 = vsel %vm365, %v1609, -1e+30
        %v1642 = vmax.f32 %v1610, %v1611
        %1643 = vmax.xlane.f32.xlu0 %v1642
        %v1644 = vpop.xlane.xlu0 %1643
        %v1645 = vmax.f32 %v1612, %v1613
        %1646 = vmax.xlane.f32.xlu0 %v1645
        %v1647 = vpop.xlane.xlu0 %1646
        %v1648 = vmax.f32 %v1614, %v1615
        %1649 = vmax.xlane.f32.xlu0 %v1648
        %v1650 = vpop.xlane.xlu0 %1649
        %v1651 = vmax.f32 %v1616, %v1617
        %1652 = vmax.xlane.f32.xlu0 %v1651
        %v1653 = vpop.xlane.xlu0 %1652
        %v1654 = vmax.f32 %v1618, %v1619
        %1655 = vmax.xlane.f32.xlu0 %v1654
        %v1656 = vpop.xlane.xlu0 %1655
        %v1657 = vmax.f32 %v1620, %v1621
        %1658 = vmax.xlane.f32.xlu0 %v1657
        %v1659 = vpop.xlane.xlu0 %1658
        %v1660 = vmax.f32 %v1622, %v1623
        %1661 = vmax.xlane.f32.xlu0 %v1660
        %v1662 = vpop.xlane.xlu0 %1661
        %v1663 = vmax.f32 %v1624, %v1625
        %1664 = vmax.xlane.f32.xlu0 %v1663
        %v1665 = vpop.xlane.xlu0 %1664
        %v1666 = vmax.f32 %v1626, %v1627
        %1667 = vmax.xlane.f32.xlu0 %v1666
        %v1668 = vpop.xlane.xlu0 %1667
        %v1669 = vmax.f32 %v1628, %v1629
        %1670 = vmax.xlane.f32.xlu0 %v1669
        %v1671 = vpop.xlane.xlu0 %1670
        %v1672 = vmax.f32 %v1630, %v1631
        %1673 = vmax.xlane.f32.xlu0 %v1672
        %v1674 = vpop.xlane.xlu0 %1673
        %v1675 = vmax.f32 %v1632, %v1633
        %1676 = vmax.xlane.f32.xlu0 %v1675
        %v1677 = vpop.xlane.xlu0 %1676
        %v1678 = vmax.f32 %v1634, %v1635
        %1679 = vmax.xlane.f32.xlu0 %v1678
        %v1680 = vpop.xlane.xlu0 %1679
        %v1681 = vmax.f32 %v1636, %v1637
        %1682 = vmax.xlane.f32.xlu0 %v1681
        %v1683 = vpop.xlane.xlu0 %1682
        %v1684 = vmax.f32 %v1638, %v1639
        %1685 = vmax.xlane.f32.xlu0 %v1684
        %v1686 = vpop.xlane.xlu0 %1685
        %v1687 = vmax.f32 %v1640, %v1641
        %1688 = vmax.xlane.f32.xlu0 %v1687
        %v1689 = vpop.xlane.xlu0 %1688
        %v1690 = vsub.f32 %v1610, %v1644
        %v1691 = vsub.f32 %v1611, %v1644
        %v1692 = vsub.f32 %v1612, %v1647
        %v1693 = vsub.f32 %v1613, %v1647
        %v1694 = vsub.f32 %v1614, %v1650
        %v1695 = vsub.f32 %v1615, %v1650
        %v1696 = vsub.f32 %v1616, %v1653
        %v1697 = vsub.f32 %v1617, %v1653
        %v1698 = vsub.f32 %v1618, %v1656
        %v1699 = vsub.f32 %v1619, %v1656
        %v1700 = vsub.f32 %v1620, %v1659
        %v1701 = vsub.f32 %v1621, %v1659
        %v1702 = vsub.f32 %v1622, %v1662
        %v1703 = vsub.f32 %v1623, %v1662
        %v1704 = vsub.f32 %v1624, %v1665
        %v1705 = vsub.f32 %v1625, %v1665
        %v1706 = vsub.f32 %v1626, %v1668
        %v1707 = vsub.f32 %v1627, %v1668
        %v1708 = vsub.f32 %v1628, %v1671
        %v1709 = vsub.f32 %v1629, %v1671
        %v1710 = vsub.f32 %v1630, %v1674
        %v1711 = vsub.f32 %v1631, %v1674
        %v1712 = vsub.f32 %v1632, %v1677
        %v1713 = vsub.f32 %v1633, %v1677
        %v1714 = vsub.f32 %v1634, %v1680
        %v1715 = vsub.f32 %v1635, %v1680
        %v1716 = vsub.f32 %v1636, %v1683
        %v1717 = vsub.f32 %v1637, %v1683
        %v1718 = vsub.f32 %v1638, %v1686
        %v1719 = vsub.f32 %v1639, %v1686
        %v1720 = vsub.f32 %v1640, %v1689
        %v1721 = vsub.f32 %v1641, %v1689
        %v1722 = vmul.f32 %v1690, 1.442695
        %v1723 = vpow.pop %v1722
        %v1724 = vmul.f32 %v1691, 1.442695
        %v1725 = vpow.pop %v1724
        %v1726 = vmul.f32 %v1692, 1.442695
        %v1727 = vpow.pop %v1726
        %v1728 = vmul.f32 %v1693, 1.442695
        %v1729 = vpow.pop %v1728
        %v1730 = vmul.f32 %v1694, 1.442695
        %v1731 = vpow.pop %v1730
        %v1732 = vmul.f32 %v1695, 1.442695
        %v1733 = vpow.pop %v1732
        %v1734 = vmul.f32 %v1696, 1.442695
        %v1735 = vpow.pop %v1734
        %v1736 = vmul.f32 %v1697, 1.442695
        %v1737 = vpow.pop %v1736
        %v1738 = vmul.f32 %v1698, 1.442695
        %v1739 = vpow.pop %v1738
        %v1740 = vmul.f32 %v1699, 1.442695
        %v1741 = vpow.pop %v1740
        %v1742 = vmul.f32 %v1700, 1.442695
        %v1743 = vpow.pop %v1742
        %v1744 = vmul.f32 %v1701, 1.442695
        %v1745 = vpow.pop %v1744
        %v1746 = vmul.f32 %v1702, 1.442695
        %v1747 = vpow.pop %v1746
        %v1748 = vmul.f32 %v1703, 1.442695
        %v1749 = vpow.pop %v1748
        %v1750 = vmul.f32 %v1704, 1.442695
        %v1751 = vpow.pop %v1750
        %v1752 = vmul.f32 %v1705, 1.442695
        %v1753 = vpow.pop %v1752
        %v1754 = vmul.f32 %v1706, 1.442695
        %v1755 = vpow.pop %v1754
        %v1756 = vmul.f32 %v1707, 1.442695
        %v1757 = vpow.pop %v1756
        %v1758 = vmul.f32 %v1708, 1.442695
        %v1759 = vpow.pop %v1758
        %v1760 = vmul.f32 %v1709, 1.442695
        %v1761 = vpow.pop %v1760
        %v1762 = vmul.f32 %v1710, 1.442695
        %v1763 = vpow.pop %v1762
        %v1764 = vmul.f32 %v1711, 1.442695
        %v1765 = vpow.pop %v1764
        %v1766 = vmul.f32 %v1712, 1.442695
        %v1767 = vpow.pop %v1766
        %v1768 = vmul.f32 %v1713, 1.442695
        %v1769 = vpow.pop %v1768
        %v1770 = vmul.f32 %v1714, 1.442695
        %v1771 = vpow.pop %v1770
        %v1772 = vmul.f32 %v1715, 1.442695
        %v1773 = vpow.pop %v1772
        %v1774 = vmul.f32 %v1716, 1.442695
        %v1775 = vpow.pop %v1774
        %v1776 = vmul.f32 %v1717, 1.442695
        %v1777 = vpow.pop %v1776
        %v1778 = vmul.f32 %v1718, 1.442695
        %v1779 = vpow.pop %v1778
        %v1780 = vmul.f32 %v1719, 1.442695
        %v1781 = vpow.pop %v1780
        %v1782 = vmul.f32 %v1720, 1.442695
        %v1783 = vpow.pop %v1782
        %v1784 = vmul.f32 %v1721, 1.442695
        %v1785 = vpow.pop %v1784
        %v1786 = vadd.f32 %v1723, %v1725
        %1787 = vadd.xlane.f32.xlu0 %v1786
        %v1788 = vpop.xlane.xlu0 %1787
        %v1789 = vadd.f32 %v1727, %v1729
        %1790 = vadd.xlane.f32.xlu0 %v1789
        %v1791 = vpop.xlane.xlu0 %1790
        %v1792 = vadd.f32 %v1731, %v1733
        %1793 = vadd.xlane.f32.xlu0 %v1792
        %v1794 = vpop.xlane.xlu0 %1793
        %v1795 = vadd.f32 %v1735, %v1737
        %1796 = vadd.xlane.f32.xlu0 %v1795
        %v1797 = vpop.xlane.xlu0 %1796
        %v1798 = vadd.f32 %v1739, %v1741
        %1799 = vadd.xlane.f32.xlu0 %v1798
        %v1800 = vpop.xlane.xlu0 %1799
        %v1801 = vadd.f32 %v1743, %v1745
        %1802 = vadd.xlane.f32.xlu0 %v1801
        %v1803 = vpop.xlane.xlu0 %1802
        %v1804 = vadd.f32 %v1747, %v1749
        %1805 = vadd.xlane.f32.xlu0 %v1804
        %v1806 = vpop.xlane.xlu0 %1805
        %v1807 = vadd.f32 %v1751, %v1753
        %1808 = vadd.xlane.f32.xlu0 %v1807
        %v1809 = vpop.xlane.xlu0 %1808
        %v1810 = vadd.f32 %v1755, %v1757
        %1811 = vadd.xlane.f32.xlu0 %v1810
        %v1812 = vpop.xlane.xlu0 %1811
        %v1813 = vadd.f32 %v1759, %v1761
        %1814 = vadd.xlane.f32.xlu0 %v1813
        %v1815 = vpop.xlane.xlu0 %1814
        %v1816 = vadd.f32 %v1763, %v1765
        %1817 = vadd.xlane.f32.xlu0 %v1816
        %v1818 = vpop.xlane.xlu0 %1817
        %v1819 = vadd.f32 %v1767, %v1769
        %1820 = vadd.xlane.f32.xlu0 %v1819
        %v1821 = vpop.xlane.xlu0 %1820
        %v1822 = vadd.f32 %v1771, %v1773
        %1823 = vadd.xlane.f32.xlu0 %v1822
        %v1824 = vpop.xlane.xlu0 %1823
        %v1825 = vadd.f32 %v1775, %v1777
        %1826 = vadd.xlane.f32.xlu0 %v1825
        %v1827 = vpop.xlane.xlu0 %1826
        %v1828 = vadd.f32 %v1779, %v1781
        %1829 = vadd.xlane.f32.xlu0 %v1828
        %v1830 = vpop.xlane.xlu0 %1829
        %v1831 = vadd.f32 %v1783, %v1785
        %1832 = vadd.xlane.f32.xlu0 %v1831
        %v1833 = vpop.xlane.xlu0 %1832
        %v1834 = vmax.f32 %v1788, 1e-30
        %v1835 = vmax.f32 %v1791, 1e-30
        %v1836 = vmax.f32 %v1794, 1e-30
        %v1837 = vmax.f32 %v1797, 1e-30
        %v1838 = vmax.f32 %v1800, 1e-30
        %v1839 = vmax.f32 %v1803, 1e-30
        %v1840 = vmax.f32 %v1806, 1e-30
        %v1841 = vmax.f32 %v1809, 1e-30
        %v1842 = vmax.f32 %v1812, 1e-30
        %v1843 = vmax.f32 %v1815, 1e-30
        %v1844 = vmax.f32 %v1818, 1e-30
        %v1845 = vmax.f32 %v1821, 1e-30
        %v1846 = vmax.f32 %v1824, 1e-30
        %v1847 = vmax.f32 %v1827, 1e-30
        %v1848 = vmax.f32 %v1830, 1e-30
        %v1849 = vmax.f32 %v1833, 1e-30
        %v1850 = vrcp.pop %v1834
        %v1851 = vrcp.pop %v1835
        %v1852 = vrcp.pop %v1836
        %v1853 = vrcp.pop %v1837
        %v1854 = vrcp.pop %v1838
        %v1855 = vrcp.pop %v1839
        %v1856 = vrcp.pop %v1840
        %v1857 = vrcp.pop %v1841
        %v1858 = vrcp.pop %v1842
        %v1859 = vrcp.pop %v1843
        %v1860 = vrcp.pop %v1844
        %v1861 = vrcp.pop %v1845
        %v1862 = vrcp.pop %v1846
        %v1863 = vrcp.pop %v1847
        %v1864 = vrcp.pop %v1848
        %v1865 = vrcp.pop %v1849
        %v1866 = vmul.f32 %v1723, %v1850
        %v1867 = vmul.f32 %v1725, %v1850
        %v1868 = vmul.f32 %v1727, %v1851
        %v1869 = vmul.f32 %v1729, %v1851
        %v1870 = vmul.f32 %v1731, %v1852
        %v1871 = vmul.f32 %v1733, %v1852
        %v1872 = vmul.f32 %v1735, %v1853
        %v1873 = vmul.f32 %v1737, %v1853
        %v1874 = vmul.f32 %v1739, %v1854
        %v1875 = vmul.f32 %v1741, %v1854
        %v1876 = vmul.f32 %v1743, %v1855
        %v1877 = vmul.f32 %v1745, %v1855
        %v1878 = vmul.f32 %v1747, %v1856
        %v1879 = vmul.f32 %v1749, %v1856
        %v1880 = vmul.f32 %v1751, %v1857
        %v1881 = vmul.f32 %v1753, %v1857
        %v1882 = vmul.f32 %v1755, %v1858
        %v1883 = vmul.f32 %v1757, %v1858
        %v1884 = vmul.f32 %v1759, %v1859
        %v1885 = vmul.f32 %v1761, %v1859
        %v1886 = vmul.f32 %v1763, %v1860
        %v1887 = vmul.f32 %v1765, %v1860
        %v1888 = vmul.f32 %v1767, %v1861
        %v1889 = vmul.f32 %v1769, %v1861
        %v1890 = vmul.f32 %v1771, %v1862
        %v1891 = vmul.f32 %v1773, %v1862
        %v1892 = vmul.f32 %v1775, %v1863
        %v1893 = vmul.f32 %v1777, %v1863
        %v1894 = vmul.f32 %v1779, %v1864
        %v1895 = vmul.f32 %v1781, %v1864
        %v1896 = vmul.f32 %v1783, %v1865
        %v1897 = vmul.f32 %v1785, %v1865
        %v1898 = vadd.f32 %v1412, %v1866
        %v1899 = vadd.f32 %v1413, %v1867
        %v1900 = vadd.f32 %v1414, %v1868
        %v1901 = vadd.f32 %v1415, %v1869
        %v1902 = vadd.f32 %v1416, %v1870
        %v1903 = vadd.f32 %v1417, %v1871
        %v1904 = vadd.f32 %v1418, %v1872
        %v1905 = vadd.f32 %v1419, %v1873
        %v1906 = vadd.f32 %v1420, %v1874
        %v1907 = vadd.f32 %v1421, %v1875
        %v1908 = vadd.f32 %v1422, %v1876
        %v1909 = vadd.f32 %v1423, %v1877
        %v1910 = vadd.f32 %v1424, %v1878
        %v1911 = vadd.f32 %v1425, %v1879
        %v1912 = vadd.f32 %v1426, %v1880
        %v1913 = vadd.f32 %v1427, %v1881
        %v1914 = vadd.f32 %v1428, %v1882
        %v1915 = vadd.f32 %v1429, %v1883
        %v1916 = vadd.f32 %v1430, %v1884
        %v1917 = vadd.f32 %v1431, %v1885
        %v1918 = vadd.f32 %v1432, %v1886
        %v1919 = vadd.f32 %v1433, %v1887
        %v1920 = vadd.f32 %v1434, %v1888
        %v1921 = vadd.f32 %v1435, %v1889
        %v1922 = vadd.f32 %v1436, %v1890
        %v1923 = vadd.f32 %v1437, %v1891
        %v1924 = vadd.f32 %v1438, %v1892
        %v1925 = vadd.f32 %v1439, %v1893
        %v1926 = vadd.f32 %v1440, %v1894
        %v1927 = vadd.f32 %v1441, %v1895
        %v1928 = vadd.f32 %v1442, %v1896
        %v1929 = vadd.f32 %v1443, %v1897
        %1930 = vset.pattern.permute.xlu0 3
        %1931 = vperm.xlu0 %1930, %v439
        %v1932 = vpop.permute.xlu0 %1931
        %1934 = vset.pattern.permute.xlu0 3
        %1935 = vperm.xlu0 %1934, %v440
        %v1936 = vpop.permute.xlu0 %1935
        %1938 = vset.pattern.permute.xlu0 3
        %1939 = vperm.xlu0 %1938, %v441
        %v1940 = vpop.permute.xlu0 %1939
        %1942 = vset.pattern.permute.xlu0 3
        %1943 = vperm.xlu0 %1942, %v442
        %v1944 = vpop.permute.xlu0 %1943
        %1946 = vset.pattern.permute.xlu0 3
        %1947 = vperm.xlu0 %1946, %v443
        %v1948 = vpop.permute.xlu0 %1947
        %1950 = vset.pattern.permute.xlu0 3
        %1951 = vperm.xlu0 %1950, %v444
        %v1952 = vpop.permute.xlu0 %1951
        %1954 = vset.pattern.permute.xlu0 3
        %1955 = vperm.xlu0 %1954, %v445
        %v1956 = vpop.permute.xlu0 %1955
        %1958 = vset.pattern.permute.xlu0 3
        %1959 = vperm.xlu0 %1958, %v446
        %v1960 = vpop.permute.xlu0 %1959
        %1962 = vset.pattern.permute.xlu0 3
        %1963 = vperm.xlu0 %1962, %v447
        %v1964 = vpop.permute.xlu0 %1963
        %1966 = vset.pattern.permute.xlu0 3
        %1967 = vperm.xlu0 %1966, %v448
        %v1968 = vpop.permute.xlu0 %1967
        %1970 = vset.pattern.permute.xlu0 3
        %1971 = vperm.xlu0 %1970, %v449
        %v1972 = vpop.permute.xlu0 %1971
        %1974 = vset.pattern.permute.xlu0 3
        %1975 = vperm.xlu0 %1974, %v450
        %v1976 = vpop.permute.xlu0 %1975
        %1978 = vset.pattern.permute.xlu0 3
        %1979 = vperm.xlu0 %1978, %v451
        %v1980 = vpop.permute.xlu0 %1979
        %1982 = vset.pattern.permute.xlu0 3
        %1983 = vperm.xlu0 %1982, %v452
        %v1984 = vpop.permute.xlu0 %1983
        %1986 = vset.pattern.permute.xlu0 3
        %1987 = vperm.xlu0 %1986, %v453
        %v1988 = vpop.permute.xlu0 %1987
        %1990 = vset.pattern.permute.xlu0 3
        %1991 = vperm.xlu0 %1990, %v454
        %v1992 = vpop.permute.xlu0 %1991
        %v1994 = vperm.slane %v438, 3
        %v1995 = vperm.slane %v438, 7
        %v1998 = vperm.slane %v1994, 3
        %v1999 = vperm.slane %v1995, 3
        %v2000 = vadd.f32 %v1932, %v1998
        %v2001 = vadd.f32 %v1932, %v1999
        %v2002 = vadd.f32 %v1936, %v1998
        %v2003 = vadd.f32 %v1936, %v1999
        %v2004 = vadd.f32 %v1940, %v1998
        %v2005 = vadd.f32 %v1940, %v1999
        %v2006 = vadd.f32 %v1944, %v1998
        %v2007 = vadd.f32 %v1944, %v1999
        %v2008 = vadd.f32 %v1948, %v1998
        %v2009 = vadd.f32 %v1948, %v1999
        %v2010 = vadd.f32 %v1952, %v1998
        %v2011 = vadd.f32 %v1952, %v1999
        %v2012 = vadd.f32 %v1956, %v1998
        %v2013 = vadd.f32 %v1956, %v1999
        %v2014 = vadd.f32 %v1960, %v1998
        %v2015 = vadd.f32 %v1960, %v1999
        %v2016 = vadd.f32 %v1964, %v1998
        %v2017 = vadd.f32 %v1964, %v1999
        %v2018 = vadd.f32 %v1968, %v1998
        %v2019 = vadd.f32 %v1968, %v1999
        %v2020 = vadd.f32 %v1972, %v1998
        %v2021 = vadd.f32 %v1972, %v1999
        %v2022 = vadd.f32 %v1976, %v1998
        %v2023 = vadd.f32 %v1976, %v1999
        %v2024 = vadd.f32 %v1980, %v1998
        %v2025 = vadd.f32 %v1980, %v1999
        %v2026 = vadd.f32 %v1984, %v1998
        %v2027 = vadd.f32 %v1984, %v1999
        %v2028 = vadd.f32 %v1988, %v1998
        %v2029 = vadd.f32 %v1988, %v1999
        %v2030 = vadd.f32 %v1992, %v1998
        %v2031 = vadd.f32 %v1992, %v1999
        %v2032 = vmul.f32 %v2000, 0.2
        %v2033 = vmul.f32 %v2001, 0.2
        %v2034 = vmul.f32 %v2002, 0.2
        %v2035 = vmul.f32 %v2003, 0.2
        %v2036 = vmul.f32 %v2004, 0.2
        %v2037 = vmul.f32 %v2005, 0.2
        %v2038 = vmul.f32 %v2006, 0.2
        %v2039 = vmul.f32 %v2007, 0.2
        %v2040 = vmul.f32 %v2008, 0.2
        %v2041 = vmul.f32 %v2009, 0.2
        %v2042 = vmul.f32 %v2010, 0.2
        %v2043 = vmul.f32 %v2011, 0.2
        %v2044 = vmul.f32 %v2012, 0.2
        %v2045 = vmul.f32 %v2013, 0.2
        %v2046 = vmul.f32 %v2014, 0.2
        %v2047 = vmul.f32 %v2015, 0.2
        %v2048 = vmul.f32 %v2016, 0.2
        %v2049 = vmul.f32 %v2017, 0.2
        %v2050 = vmul.f32 %v2018, 0.2
        %v2051 = vmul.f32 %v2019, 0.2
        %v2052 = vmul.f32 %v2020, 0.2
        %v2053 = vmul.f32 %v2021, 0.2
        %v2054 = vmul.f32 %v2022, 0.2
        %v2055 = vmul.f32 %v2023, 0.2
        %v2056 = vmul.f32 %v2024, 0.2
        %v2057 = vmul.f32 %v2025, 0.2
        %v2058 = vmul.f32 %v2026, 0.2
        %v2059 = vmul.f32 %v2027, 0.2
        %v2060 = vmul.f32 %v2028, 0.2
        %v2061 = vmul.f32 %v2029, 0.2
        %v2062 = vmul.f32 %v2030, 0.2
        %v2063 = vmul.f32 %v2031, 0.2
        %v2064 = vmax.f32 %v2000, %v2032
        %v2065 = vmax.f32 %v2001, %v2033
        %v2066 = vmax.f32 %v2002, %v2034
        %v2067 = vmax.f32 %v2003, %v2035
        %v2068 = vmax.f32 %v2004, %v2036
        %v2069 = vmax.f32 %v2005, %v2037
        %v2070 = vmax.f32 %v2006, %v2038
        %v2071 = vmax.f32 %v2007, %v2039
        %v2072 = vmax.f32 %v2008, %v2040
        %v2073 = vmax.f32 %v2009, %v2041
        %v2074 = vmax.f32 %v2010, %v2042
        %v2075 = vmax.f32 %v2011, %v2043
        %v2076 = vmax.f32 %v2012, %v2044
        %v2077 = vmax.f32 %v2013, %v2045
        %v2078 = vmax.f32 %v2014, %v2046
        %v2079 = vmax.f32 %v2015, %v2047
        %v2080 = vmax.f32 %v2016, %v2048
        %v2081 = vmax.f32 %v2017, %v2049
        %v2082 = vmax.f32 %v2018, %v2050
        %v2083 = vmax.f32 %v2019, %v2051
        %v2084 = vmax.f32 %v2020, %v2052
        %v2085 = vmax.f32 %v2021, %v2053
        %v2086 = vmax.f32 %v2022, %v2054
        %v2087 = vmax.f32 %v2023, %v2055
        %v2088 = vmax.f32 %v2024, %v2056
        %v2089 = vmax.f32 %v2025, %v2057
        %v2090 = vmax.f32 %v2026, %v2058
        %v2091 = vmax.f32 %v2027, %v2059
        %v2092 = vmax.f32 %v2028, %v2060
        %v2093 = vmax.f32 %v2029, %v2061
        %v2094 = vmax.f32 %v2030, %v2062
        %v2095 = vmax.f32 %v2031, %v2063
        %v2096 = vsel %vm334, %v2064, -1e+30
        %v2097 = vsel %vm335, %v2065, -1e+30
        %v2098 = vsel %vm336, %v2066, -1e+30
        %v2099 = vsel %vm337, %v2067, -1e+30
        %v2100 = vsel %vm338, %v2068, -1e+30
        %v2101 = vsel %vm339, %v2069, -1e+30
        %v2102 = vsel %vm340, %v2070, -1e+30
        %v2103 = vsel %vm341, %v2071, -1e+30
        %v2104 = vsel %vm342, %v2072, -1e+30
        %v2105 = vsel %vm343, %v2073, -1e+30
        %v2106 = vsel %vm344, %v2074, -1e+30
        %v2107 = vsel %vm345, %v2075, -1e+30
        %v2108 = vsel %vm346, %v2076, -1e+30
        %v2109 = vsel %vm347, %v2077, -1e+30
        %v2110 = vsel %vm348, %v2078, -1e+30
        %v2111 = vsel %vm349, %v2079, -1e+30
        %v2112 = vsel %vm350, %v2080, -1e+30
        %v2113 = vsel %vm351, %v2081, -1e+30
        %v2114 = vsel %vm352, %v2082, -1e+30
        %v2115 = vsel %vm353, %v2083, -1e+30
        %v2116 = vsel %vm354, %v2084, -1e+30
        %v2117 = vsel %vm355, %v2085, -1e+30
        %v2118 = vsel %vm356, %v2086, -1e+30
        %v2119 = vsel %vm357, %v2087, -1e+30
        %v2120 = vsel %vm358, %v2088, -1e+30
        %v2121 = vsel %vm359, %v2089, -1e+30
        %v2122 = vsel %vm360, %v2090, -1e+30
        %v2123 = vsel %vm361, %v2091, -1e+30
        %v2124 = vsel %vm362, %v2092, -1e+30
        %v2125 = vsel %vm363, %v2093, -1e+30
        %v2126 = vsel %vm364, %v2094, -1e+30
        %v2127 = vsel %vm365, %v2095, -1e+30
        %v2128 = vmax.f32 %v2096, %v2097
        %2129 = vmax.xlane.f32.xlu0 %v2128
        %v2130 = vpop.xlane.xlu0 %2129
        %v2131 = vmax.f32 %v2098, %v2099
        %2132 = vmax.xlane.f32.xlu0 %v2131
        %v2133 = vpop.xlane.xlu0 %2132
        %v2134 = vmax.f32 %v2100, %v2101
        %2135 = vmax.xlane.f32.xlu0 %v2134
        %v2136 = vpop.xlane.xlu0 %2135
        %v2137 = vmax.f32 %v2102, %v2103
        %2138 = vmax.xlane.f32.xlu0 %v2137
        %v2139 = vpop.xlane.xlu0 %2138
        %v2140 = vmax.f32 %v2104, %v2105
        %2141 = vmax.xlane.f32.xlu0 %v2140
        %v2142 = vpop.xlane.xlu0 %2141
        %v2143 = vmax.f32 %v2106, %v2107
        %2144 = vmax.xlane.f32.xlu0 %v2143
        %v2145 = vpop.xlane.xlu0 %2144
        %v2146 = vmax.f32 %v2108, %v2109
        %2147 = vmax.xlane.f32.xlu0 %v2146
        %v2148 = vpop.xlane.xlu0 %2147
        %v2149 = vmax.f32 %v2110, %v2111
        %2150 = vmax.xlane.f32.xlu0 %v2149
        %v2151 = vpop.xlane.xlu0 %2150
        %v2152 = vmax.f32 %v2112, %v2113
        %2153 = vmax.xlane.f32.xlu0 %v2152
        %v2154 = vpop.xlane.xlu0 %2153
        %v2155 = vmax.f32 %v2114, %v2115
        %2156 = vmax.xlane.f32.xlu0 %v2155
        %v2157 = vpop.xlane.xlu0 %2156
        %v2158 = vmax.f32 %v2116, %v2117
        %2159 = vmax.xlane.f32.xlu0 %v2158
        %v2160 = vpop.xlane.xlu0 %2159
        %v2161 = vmax.f32 %v2118, %v2119
        %2162 = vmax.xlane.f32.xlu0 %v2161
        %v2163 = vpop.xlane.xlu0 %2162
        %v2164 = vmax.f32 %v2120, %v2121
        %2165 = vmax.xlane.f32.xlu0 %v2164
        %v2166 = vpop.xlane.xlu0 %2165
        %v2167 = vmax.f32 %v2122, %v2123
        %2168 = vmax.xlane.f32.xlu0 %v2167
        %v2169 = vpop.xlane.xlu0 %2168
        %v2170 = vmax.f32 %v2124, %v2125
        %2171 = vmax.xlane.f32.xlu0 %v2170
        %v2172 = vpop.xlane.xlu0 %2171
        %v2173 = vmax.f32 %v2126, %v2127
        %2174 = vmax.xlane.f32.xlu0 %v2173
        %v2175 = vpop.xlane.xlu0 %2174
        %v2176 = vsub.f32 %v2096, %v2130
        %v2177 = vsub.f32 %v2097, %v2130
        %v2178 = vsub.f32 %v2098, %v2133
        %v2179 = vsub.f32 %v2099, %v2133
        %v2180 = vsub.f32 %v2100, %v2136
        %v2181 = vsub.f32 %v2101, %v2136
        %v2182 = vsub.f32 %v2102, %v2139
        %v2183 = vsub.f32 %v2103, %v2139
        %v2184 = vsub.f32 %v2104, %v2142
        %v2185 = vsub.f32 %v2105, %v2142
        %v2186 = vsub.f32 %v2106, %v2145
        %v2187 = vsub.f32 %v2107, %v2145
        %v2188 = vsub.f32 %v2108, %v2148
        %v2189 = vsub.f32 %v2109, %v2148
        %v2190 = vsub.f32 %v2110, %v2151
        %v2191 = vsub.f32 %v2111, %v2151
        %v2192 = vsub.f32 %v2112, %v2154
        %v2193 = vsub.f32 %v2113, %v2154
        %v2194 = vsub.f32 %v2114, %v2157
        %v2195 = vsub.f32 %v2115, %v2157
        %v2196 = vsub.f32 %v2116, %v2160
        %v2197 = vsub.f32 %v2117, %v2160
        %v2198 = vsub.f32 %v2118, %v2163
        %v2199 = vsub.f32 %v2119, %v2163
        %v2200 = vsub.f32 %v2120, %v2166
        %v2201 = vsub.f32 %v2121, %v2166
        %v2202 = vsub.f32 %v2122, %v2169
        %v2203 = vsub.f32 %v2123, %v2169
        %v2204 = vsub.f32 %v2124, %v2172
        %v2205 = vsub.f32 %v2125, %v2172
        %v2206 = vsub.f32 %v2126, %v2175
        %v2207 = vsub.f32 %v2127, %v2175
        %v2208 = vmul.f32 %v2176, 1.442695
        %v2209 = vpow.pop %v2208
        %v2210 = vmul.f32 %v2177, 1.442695
        %v2211 = vpow.pop %v2210
        %v2212 = vmul.f32 %v2178, 1.442695
        %v2213 = vpow.pop %v2212
        %v2214 = vmul.f32 %v2179, 1.442695
        %v2215 = vpow.pop %v2214
        %v2216 = vmul.f32 %v2180, 1.442695
        %v2217 = vpow.pop %v2216
        %v2218 = vmul.f32 %v2181, 1.442695
        %v2219 = vpow.pop %v2218
        %v2220 = vmul.f32 %v2182, 1.442695
        %v2221 = vpow.pop %v2220
        %v2222 = vmul.f32 %v2183, 1.442695
        %v2223 = vpow.pop %v2222
        %v2224 = vmul.f32 %v2184, 1.442695
        %v2225 = vpow.pop %v2224
        %v2226 = vmul.f32 %v2185, 1.442695
        %v2227 = vpow.pop %v2226
        %v2228 = vmul.f32 %v2186, 1.442695
        %v2229 = vpow.pop %v2228
        %v2230 = vmul.f32 %v2187, 1.442695
        %v2231 = vpow.pop %v2230
        %v2232 = vmul.f32 %v2188, 1.442695
        %v2233 = vpow.pop %v2232
        %v2234 = vmul.f32 %v2189, 1.442695
        %v2235 = vpow.pop %v2234
        %v2236 = vmul.f32 %v2190, 1.442695
        %v2237 = vpow.pop %v2236
        %v2238 = vmul.f32 %v2191, 1.442695
        %v2239 = vpow.pop %v2238
        %v2240 = vmul.f32 %v2192, 1.442695
        %v2241 = vpow.pop %v2240
        %v2242 = vmul.f32 %v2193, 1.442695
        %v2243 = vpow.pop %v2242
        %v2244 = vmul.f32 %v2194, 1.442695
        %v2245 = vpow.pop %v2244
        %v2246 = vmul.f32 %v2195, 1.442695
        %v2247 = vpow.pop %v2246
        %v2248 = vmul.f32 %v2196, 1.442695
        %v2249 = vpow.pop %v2248
        %v2250 = vmul.f32 %v2197, 1.442695
        %v2251 = vpow.pop %v2250
        %v2252 = vmul.f32 %v2198, 1.442695
        %v2253 = vpow.pop %v2252
        %v2254 = vmul.f32 %v2199, 1.442695
        %v2255 = vpow.pop %v2254
        %v2256 = vmul.f32 %v2200, 1.442695
        %v2257 = vpow.pop %v2256
        %v2258 = vmul.f32 %v2201, 1.442695
        %v2259 = vpow.pop %v2258
        %v2260 = vmul.f32 %v2202, 1.442695
        %v2261 = vpow.pop %v2260
        %v2262 = vmul.f32 %v2203, 1.442695
        %v2263 = vpow.pop %v2262
        %v2264 = vmul.f32 %v2204, 1.442695
        %v2265 = vpow.pop %v2264
        %v2266 = vmul.f32 %v2205, 1.442695
        %v2267 = vpow.pop %v2266
        %v2268 = vmul.f32 %v2206, 1.442695
        %v2269 = vpow.pop %v2268
        %v2270 = vmul.f32 %v2207, 1.442695
        %v2271 = vpow.pop %v2270
        %v2272 = vadd.f32 %v2209, %v2211
        %2273 = vadd.xlane.f32.xlu0 %v2272
        %v2274 = vpop.xlane.xlu0 %2273
        %v2275 = vadd.f32 %v2213, %v2215
        %2276 = vadd.xlane.f32.xlu0 %v2275
        %v2277 = vpop.xlane.xlu0 %2276
        %v2278 = vadd.f32 %v2217, %v2219
        %2279 = vadd.xlane.f32.xlu0 %v2278
        %v2280 = vpop.xlane.xlu0 %2279
        %v2281 = vadd.f32 %v2221, %v2223
        %2282 = vadd.xlane.f32.xlu0 %v2281
        %v2283 = vpop.xlane.xlu0 %2282
        %v2284 = vadd.f32 %v2225, %v2227
        %2285 = vadd.xlane.f32.xlu0 %v2284
        %v2286 = vpop.xlane.xlu0 %2285
        %v2287 = vadd.f32 %v2229, %v2231
        %2288 = vadd.xlane.f32.xlu0 %v2287
        %v2289 = vpop.xlane.xlu0 %2288
        %v2290 = vadd.f32 %v2233, %v2235
        %2291 = vadd.xlane.f32.xlu0 %v2290
        %v2292 = vpop.xlane.xlu0 %2291
        %v2293 = vadd.f32 %v2237, %v2239
        %2294 = vadd.xlane.f32.xlu0 %v2293
        %v2295 = vpop.xlane.xlu0 %2294
        %v2296 = vadd.f32 %v2241, %v2243
        %2297 = vadd.xlane.f32.xlu0 %v2296
        %v2298 = vpop.xlane.xlu0 %2297
        %v2299 = vadd.f32 %v2245, %v2247
        %2300 = vadd.xlane.f32.xlu0 %v2299
        %v2301 = vpop.xlane.xlu0 %2300
        %v2302 = vadd.f32 %v2249, %v2251
        %2303 = vadd.xlane.f32.xlu0 %v2302
        %v2304 = vpop.xlane.xlu0 %2303
        %v2305 = vadd.f32 %v2253, %v2255
        %2306 = vadd.xlane.f32.xlu0 %v2305
        %v2307 = vpop.xlane.xlu0 %2306
        %v2308 = vadd.f32 %v2257, %v2259
        %2309 = vadd.xlane.f32.xlu0 %v2308
        %v2310 = vpop.xlane.xlu0 %2309
        %v2311 = vadd.f32 %v2261, %v2263
        %2312 = vadd.xlane.f32.xlu0 %v2311
        %v2313 = vpop.xlane.xlu0 %2312
        %v2314 = vadd.f32 %v2265, %v2267
        %2315 = vadd.xlane.f32.xlu0 %v2314
        %v2316 = vpop.xlane.xlu0 %2315
        %v2317 = vadd.f32 %v2269, %v2271
        %2318 = vadd.xlane.f32.xlu0 %v2317
        %v2319 = vpop.xlane.xlu0 %2318
        %v2320 = vmax.f32 %v2274, 1e-30
        %v2321 = vmax.f32 %v2277, 1e-30
        %v2322 = vmax.f32 %v2280, 1e-30
        %v2323 = vmax.f32 %v2283, 1e-30
        %v2324 = vmax.f32 %v2286, 1e-30
        %v2325 = vmax.f32 %v2289, 1e-30
        %v2326 = vmax.f32 %v2292, 1e-30
        %v2327 = vmax.f32 %v2295, 1e-30
        %v2328 = vmax.f32 %v2298, 1e-30
        %v2329 = vmax.f32 %v2301, 1e-30
        %v2330 = vmax.f32 %v2304, 1e-30
        %v2331 = vmax.f32 %v2307, 1e-30
        %v2332 = vmax.f32 %v2310, 1e-30
        %v2333 = vmax.f32 %v2313, 1e-30
        %v2334 = vmax.f32 %v2316, 1e-30
        %v2335 = vmax.f32 %v2319, 1e-30
        %v2336 = vrcp.pop %v2320
        %v2337 = vrcp.pop %v2321
        %v2338 = vrcp.pop %v2322
        %v2339 = vrcp.pop %v2323
        %v2340 = vrcp.pop %v2324
        %v2341 = vrcp.pop %v2325
        %v2342 = vrcp.pop %v2326
        %v2343 = vrcp.pop %v2327
        %v2344 = vrcp.pop %v2328
        %v2345 = vrcp.pop %v2329
        %v2346 = vrcp.pop %v2330
        %v2347 = vrcp.pop %v2331
        %v2348 = vrcp.pop %v2332
        %v2349 = vrcp.pop %v2333
        %v2350 = vrcp.pop %v2334
        %v2351 = vrcp.pop %v2335
        %v2352 = vmul.f32 %v2209, %v2336
        %v2353 = vmul.f32 %v2211, %v2336
        %v2354 = vmul.f32 %v2213, %v2337
        %v2355 = vmul.f32 %v2215, %v2337
        %v2356 = vmul.f32 %v2217, %v2338
        %v2357 = vmul.f32 %v2219, %v2338
        %v2358 = vmul.f32 %v2221, %v2339
        %v2359 = vmul.f32 %v2223, %v2339
        %v2360 = vmul.f32 %v2225, %v2340
        %v2361 = vmul.f32 %v2227, %v2340
        %v2362 = vmul.f32 %v2229, %v2341
        %v2363 = vmul.f32 %v2231, %v2341
        %v2364 = vmul.f32 %v2233, %v2342
        %v2365 = vmul.f32 %v2235, %v2342
        %v2366 = vmul.f32 %v2237, %v2343
        %v2367 = vmul.f32 %v2239, %v2343
        %v2368 = vmul.f32 %v2241, %v2344
        %v2369 = vmul.f32 %v2243, %v2344
        %v2370 = vmul.f32 %v2245, %v2345
        %v2371 = vmul.f32 %v2247, %v2345
        %v2372 = vmul.f32 %v2249, %v2346
        %v2373 = vmul.f32 %v2251, %v2346
        %v2374 = vmul.f32 %v2253, %v2347
        %v2375 = vmul.f32 %v2255, %v2347
        %v2376 = vmul.f32 %v2257, %v2348
        %v2377 = vmul.f32 %v2259, %v2348
        %v2378 = vmul.f32 %v2261, %v2349
        %v2379 = vmul.f32 %v2263, %v2349
        %v2380 = vmul.f32 %v2265, %v2350
        %v2381 = vmul.f32 %v2267, %v2350
        %v2382 = vmul.f32 %v2269, %v2351
        %v2383 = vmul.f32 %v2271, %v2351
        %v2384 = vadd.f32 %v1898, %v2352
        %v2385 = vadd.f32 %v1899, %v2353
        %v2386 = vadd.f32 %v1900, %v2354
        %v2387 = vadd.f32 %v1901, %v2355
        %v2388 = vadd.f32 %v1902, %v2356
        %v2389 = vadd.f32 %v1903, %v2357
        %v2390 = vadd.f32 %v1904, %v2358
        %v2391 = vadd.f32 %v1905, %v2359
        %v2392 = vadd.f32 %v1906, %v2360
        %v2393 = vadd.f32 %v1907, %v2361
        %v2394 = vadd.f32 %v1908, %v2362
        %v2395 = vadd.f32 %v1909, %v2363
        %v2396 = vadd.f32 %v1910, %v2364
        %v2397 = vadd.f32 %v1911, %v2365
        %v2398 = vadd.f32 %v1912, %v2366
        %v2399 = vadd.f32 %v1913, %v2367
        %v2400 = vadd.f32 %v1914, %v2368
        %v2401 = vadd.f32 %v1915, %v2369
        %v2402 = vadd.f32 %v1916, %v2370
        %v2403 = vadd.f32 %v1917, %v2371
        %v2404 = vadd.f32 %v1918, %v2372
        %v2405 = vadd.f32 %v1919, %v2373
        %v2406 = vadd.f32 %v1920, %v2374
        %v2407 = vadd.f32 %v1921, %v2375
        %v2408 = vadd.f32 %v1922, %v2376
        %v2409 = vadd.f32 %v1923, %v2377
        %v2410 = vadd.f32 %v1924, %v2378
        %v2411 = vadd.f32 %v1925, %v2379
        %v2412 = vadd.f32 %v1926, %v2380
        %v2413 = vadd.f32 %v1927, %v2381
        %v2414 = vadd.f32 %v1928, %v2382
        %v2415 = vadd.f32 %v1929, %v2383
        %v2416 = vsel %vm368, %v2384, 0.0
        %v2417 = vsel %vm369, %v2385, 0.0
        %v2418 = vsel %vm370, %v2386, 0.0
        %v2419 = vsel %vm371, %v2387, 0.0
        %v2420 = vsel %vm372, %v2388, 0.0
        %v2421 = vsel %vm373, %v2389, 0.0
        %v2422 = vsel %vm374, %v2390, 0.0
        %v2423 = vsel %vm375, %v2391, 0.0
        %v2424 = vsel %vm376, %v2392, 0.0
        %v2425 = vsel %vm377, %v2393, 0.0
        %v2426 = vsel %vm378, %v2394, 0.0
        %v2427 = vsel %vm379, %v2395, 0.0
        %v2428 = vsel %vm380, %v2396, 0.0
        %v2429 = vsel %vm381, %v2397, 0.0
        %v2430 = vsel %vm382, %v2398, 0.0
        %v2431 = vsel %vm383, %v2399, 0.0
        %v2432 = vsel %vm384, %v2400, 0.0
        %v2433 = vsel %vm385, %v2401, 0.0
        %v2434 = vsel %vm386, %v2402, 0.0
        %v2435 = vsel %vm387, %v2403, 0.0
        %v2436 = vsel %vm388, %v2404, 0.0
        %v2437 = vsel %vm389, %v2405, 0.0
        %v2438 = vsel %vm390, %v2406, 0.0
        %v2439 = vsel %vm391, %v2407, 0.0
        %v2440 = vsel %vm392, %v2408, 0.0
        %v2441 = vsel %vm393, %v2409, 0.0
        %v2442 = vsel %vm394, %v2410, 0.0
        %v2443 = vsel %vm395, %v2411, 0.0
        %v2444 = vsel %vm396, %v2412, 0.0
        %v2445 = vsel %vm397, %v2413, 0.0
        %v2446 = vsel %vm398, %v2414, 0.0
        %v2447 = vsel %vm399, %v2415, 0.0
        %v2448 = vpack.c.bf16 %v2418, %v2416
        %v2449 = vpack.c.bf16 %v2419, %v2417
        %v2450 = vpack.c.bf16 %v2422, %v2420
        %v2451 = vpack.c.bf16 %v2423, %v2421
        %v2452 = vpack.c.bf16 %v2426, %v2424
        %v2453 = vpack.c.bf16 %v2427, %v2425
        %v2454 = vpack.c.bf16 %v2430, %v2428
        %v2455 = vpack.c.bf16 %v2431, %v2429
        %v2456 = vpack.c.bf16 %v2434, %v2432
        %v2457 = vpack.c.bf16 %v2435, %v2433
        %v2458 = vpack.c.bf16 %v2438, %v2436
        %v2459 = vpack.c.bf16 %v2439, %v2437
        %v2460 = vpack.c.bf16 %v2442, %v2440
        %v2461 = vpack.c.bf16 %v2443, %v2441
        %v2462 = vpack.c.bf16 %v2446, %v2444
        %v2463 = vpack.c.bf16 %v2447, %v2445
        %v2464 = vld [vmem:[%s259] sm:$0xff]
        %v2465 = vld [vmem:[%s259 + $0x8] sm:$0xff]
        %v2466 = vld [vmem:[%s259 + $0x10] sm:$0xff]
        %v2467 = vld [vmem:[%s259 + $0x18] sm:$0xff]
        %v2468 = vld [vmem:[%s259 + $0x20] sm:$0xff]
        %v2469 = vld [vmem:[%s259 + $0x28] sm:$0xff]
        %v2470 = vld [vmem:[%s259 + $0x30] sm:$0xff]
        %v2471 = vld [vmem:[%s259 + $0x38] sm:$0xff]
        %v2472 = vld [vmem:[%s259 + $0x40] sm:$0xff]
        %v2473 = vld [vmem:[%s259 + $0x48] sm:$0xff]
        %v2474 = vld [vmem:[%s259 + $0x50] sm:$0xff]
        %v2475 = vld [vmem:[%s259 + $0x58] sm:$0xff]
        %v2476 = vld [vmem:[%s259 + $0x60] sm:$0xff]
        %v2477 = vld [vmem:[%s259 + $0x68] sm:$0xff]
        %v2478 = vld [vmem:[%s259 + $0x70] sm:$0xff]
        %v2479 = vld [vmem:[%s259 + $0x78] sm:$0xff]
        %v2512 = vunpack.c.l.b16 %v403
        %v2513 = vunpack.c.l.b16 %v404
        %v2514 = vunpack.c.l.b16 %v405
        %v2515 = vunpack.c.l.b16 %v406
        %v2516 = vunpack.c.l.b16 %v407
        %v2517 = vunpack.c.l.b16 %v408
        %v2518 = vunpack.c.l.b16 %v409
        %v2519 = vunpack.c.l.b16 %v410
        %v2520 = vunpack.c.l.b16 %v411
        %v2521 = vunpack.c.l.b16 %v412
        %v2522 = vunpack.c.l.b16 %v413
        %v2523 = vunpack.c.l.b16 %v414
        %v2524 = vunpack.c.l.b16 %v415
        %v2525 = vunpack.c.l.b16 %v416
        %v2526 = vunpack.c.l.b16 %v417
        %v2527 = vunpack.c.l.b16 %v418
        %v2528 = vunpack.c.l.b16 %v419
        %v2529 = vunpack.c.l.b16 %v420
        %v2530 = vunpack.c.l.b16 %v421
        %v2531 = vunpack.c.l.b16 %v422
        %v2532 = vunpack.c.l.b16 %v423
        %v2533 = vunpack.c.l.b16 %v424
        %v2534 = vunpack.c.l.b16 %v425
        %v2535 = vunpack.c.l.b16 %v426
        %v2536 = vunpack.c.l.b16 %v427
        %v2537 = vunpack.c.l.b16 %v428
        %v2538 = vunpack.c.l.b16 %v429
        %v2539 = vunpack.c.l.b16 %v430
        %v2540 = vunpack.c.l.b16 %v431
        %v2541 = vunpack.c.l.b16 %v432
        %v2542 = vunpack.c.l.b16 %v433
        %v2543 = vunpack.c.l.b16 %v434
        %v2544 = vpack.c.b16 %v2513, %v2512
        %v2545 = vpack.c.b16 %v2515, %v2514
        %v2546 = vpack.c.b16 %v2517, %v2516
        %v2547 = vpack.c.b16 %v2519, %v2518
        %v2548 = vpack.c.b16 %v2521, %v2520
        %v2549 = vpack.c.b16 %v2523, %v2522
        %v2550 = vpack.c.b16 %v2525, %v2524
        %v2551 = vpack.c.b16 %v2527, %v2526
        %v2552 = vpack.c.b16 %v2529, %v2528
        %v2553 = vpack.c.b16 %v2531, %v2530
        %v2554 = vpack.c.b16 %v2533, %v2532
        %v2555 = vpack.c.b16 %v2535, %v2534
        %v2556 = vpack.c.b16 %v2537, %v2536
        %v2557 = vpack.c.b16 %v2539, %v2538
        %v2558 = vpack.c.b16 %v2541, %v2540
        %v2559 = vpack.c.b16 %v2543, %v2542
        %2576 = vmatpush.bf16.msra.mxu0 %v2551
        %2577 = vmatpush.bf16.msra.mxu0 %v2550
        %2578 = vmatpush.bf16.msra.mxu0 %v2549
        %2579 = vmatpush.bf16.msra.mxu0 %v2548
        %2580 = vmatpush.bf16.msra.mxu0 %v2547
        %2581 = vmatpush.bf16.msra.mxu0 %v2546
        %2582 = vmatpush.bf16.msra.mxu0 %v2545
        %2583 = vmatpush.bf16.msra.mxu0 %v2544
        %2584 = vmatmul.bf16.gmra.mxu0 %v2448
        %v2585 = vpop.f32.mrf.mxu0
        %v2586 = vadd.f32 0.0, %v2585
        %v2587 = vpop.f32.mrf.mxu0
        %v2588 = vadd.f32 0.0, %v2587
        %2589 = vmatmul.bf16.gmra.mxu0 %v2450
        %v2590 = vpop.f32.mrf.mxu0
        %v2591 = vadd.f32 0.0, %v2590
        %v2592 = vpop.f32.mrf.mxu0
        %v2593 = vadd.f32 0.0, %v2592
        %2594 = vmatmul.bf16.gmra.mxu0 %v2452
        %v2595 = vpop.f32.mrf.mxu0
        %v2596 = vadd.f32 0.0, %v2595
        %v2597 = vpop.f32.mrf.mxu0
        %v2598 = vadd.f32 0.0, %v2597
        %2599 = vmatmul.bf16.gmra.mxu0 %v2454
        %v2600 = vpop.f32.mrf.mxu0
        %v2601 = vadd.f32 0.0, %v2600
        %v2602 = vpop.f32.mrf.mxu0
        %v2603 = vadd.f32 0.0, %v2602
        %2604 = vmatmul.bf16.gmra.mxu0 %v2456
        %v2605 = vpop.f32.mrf.mxu0
        %v2606 = vadd.f32 0.0, %v2605
        %v2607 = vpop.f32.mrf.mxu0
        %v2608 = vadd.f32 0.0, %v2607
        %2609 = vmatmul.bf16.gmra.mxu0 %v2458
        %v2610 = vpop.f32.mrf.mxu0
        %v2611 = vadd.f32 0.0, %v2610
        %v2612 = vpop.f32.mrf.mxu0
        %v2613 = vadd.f32 0.0, %v2612
        %2614 = vmatmul.bf16.gmra.mxu0 %v2460
        %v2615 = vpop.f32.mrf.mxu0
        %v2616 = vadd.f32 0.0, %v2615
        %v2617 = vpop.f32.mrf.mxu0
        %v2618 = vadd.f32 0.0, %v2617
        %2619 = vmatmul.bf16.gmra.mxu0 %v2462
        %v2620 = vpop.f32.mrf.mxu0
        %v2621 = vadd.f32 0.0, %v2620
        %v2622 = vpop.f32.mrf.mxu0
        %v2623 = vadd.f32 0.0, %v2622
        %2624 = vdwg.mxu0
        %2625 = vmatpush.bf16.msra.mxu0 %v2559
        %2626 = vmatpush.bf16.msra.mxu0 %v2558
        %2627 = vmatpush.bf16.msra.mxu0 %v2557
        %2628 = vmatpush.bf16.msra.mxu0 %v2556
        %2629 = vmatpush.bf16.msra.mxu0 %v2555
        %2630 = vmatpush.bf16.msra.mxu0 %v2554
        %2631 = vmatpush.bf16.msra.mxu0 %v2553
        %2632 = vmatpush.bf16.msra.mxu0 %v2552
        %2633 = vmatmul.bf16.gmra.mxu0 %v2449
        %v2634 = vpop.f32.mrf.mxu0
        %v2635 = vadd.f32 %v2586, %v2634
        %v2636 = vpop.f32.mrf.mxu0
        %v2637 = vadd.f32 %v2588, %v2636
        %2638 = vmatmul.bf16.gmra.mxu0 %v2451
        %v2639 = vpop.f32.mrf.mxu0
        %v2640 = vadd.f32 %v2591, %v2639
        %v2641 = vpop.f32.mrf.mxu0
        %v2642 = vadd.f32 %v2593, %v2641
        %2643 = vmatmul.bf16.gmra.mxu0 %v2453
        %v2644 = vpop.f32.mrf.mxu0
        %v2645 = vadd.f32 %v2596, %v2644
        %v2646 = vpop.f32.mrf.mxu0
        %v2647 = vadd.f32 %v2598, %v2646
        %2648 = vmatmul.bf16.gmra.mxu0 %v2455
        %v2649 = vpop.f32.mrf.mxu0
        %v2650 = vadd.f32 %v2601, %v2649
        %v2651 = vpop.f32.mrf.mxu0
        %v2652 = vadd.f32 %v2603, %v2651
        %2653 = vmatmul.bf16.gmra.mxu0 %v2457
        %v2654 = vpop.f32.mrf.mxu0
        %v2655 = vadd.f32 %v2606, %v2654
        %v2656 = vpop.f32.mrf.mxu0
        %v2657 = vadd.f32 %v2608, %v2656
        %2658 = vmatmul.bf16.gmra.mxu0 %v2459
        %v2659 = vpop.f32.mrf.mxu0
        %v2660 = vadd.f32 %v2611, %v2659
        %v2661 = vpop.f32.mrf.mxu0
        %v2662 = vadd.f32 %v2613, %v2661
        %2663 = vmatmul.bf16.gmra.mxu0 %v2461
        %v2664 = vpop.f32.mrf.mxu0
        %v2665 = vadd.f32 %v2616, %v2664
        %v2666 = vpop.f32.mrf.mxu0
        %v2667 = vadd.f32 %v2618, %v2666
        %2668 = vmatmul.bf16.gmra.mxu0 %v2463
        %v2669 = vpop.f32.mrf.mxu0
        %v2670 = vadd.f32 %v2621, %v2669
        %v2671 = vpop.f32.mrf.mxu0
        %v2672 = vadd.f32 %v2623, %v2671
        %2673 = vdwg.mxu0
        %v2674 = vadd.f32 %v2464, %v2635
        %v2675 = vadd.f32 %v2465, %v2637
        %v2676 = vadd.f32 %v2466, %v2640
        %v2677 = vadd.f32 %v2467, %v2642
        %v2678 = vadd.f32 %v2468, %v2645
        %v2679 = vadd.f32 %v2469, %v2647
        %v2680 = vadd.f32 %v2470, %v2650
        %v2681 = vadd.f32 %v2471, %v2652
        %v2682 = vadd.f32 %v2472, %v2655
        %v2683 = vadd.f32 %v2473, %v2657
        %v2684 = vadd.f32 %v2474, %v2660
        %v2685 = vadd.f32 %v2475, %v2662
        %v2686 = vadd.f32 %v2476, %v2665
        %v2687 = vadd.f32 %v2477, %v2667
        %v2688 = vadd.f32 %v2478, %v2670
        %v2689 = vadd.f32 %v2479, %v2672
        %vm2690 = vcmask 261120
        %2691 = vst.msk [vmem:[%s259] sm:$0xff] %vm2690, %v2674
        %2692 = vst.msk [vmem:[%s259 + $0x8] sm:$0xff] %vm2690, %v2675
        %2693 = vst.msk [vmem:[%s259 + $0x10] sm:$0xff] %vm2690, %v2676
        %2694 = vst.msk [vmem:[%s259 + $0x18] sm:$0xff] %vm2690, %v2677
        %2695 = vst.msk [vmem:[%s259 + $0x20] sm:$0xff] %vm2690, %v2678
        %2696 = vst.msk [vmem:[%s259 + $0x28] sm:$0xff] %vm2690, %v2679
        %2697 = vst.msk [vmem:[%s259 + $0x30] sm:$0xff] %vm2690, %v2680
        %2698 = vst.msk [vmem:[%s259 + $0x38] sm:$0xff] %vm2690, %v2681
        %2699 = vst.msk [vmem:[%s259 + $0x40] sm:$0xff] %vm2690, %v2682
        %2700 = vst.msk [vmem:[%s259 + $0x48] sm:$0xff] %vm2690, %v2683
        %2701 = vst.msk [vmem:[%s259 + $0x50] sm:$0xff] %vm2690, %v2684
        %2702 = vst.msk [vmem:[%s259 + $0x58] sm:$0xff] %vm2690, %v2685
        %2703 = vst.msk [vmem:[%s259 + $0x60] sm:$0xff] %vm2690, %v2686
        %2704 = vst.msk [vmem:[%s259 + $0x68] sm:$0xff] %vm2690, %v2687
        %2705 = vst.msk [vmem:[%s259 + $0x70] sm:$0xff] %vm2690, %v2688
        %2706 = vst.msk [vmem:[%s259 + $0x78] sm:$0xff] %vm2690, %v2689
      $region44: #{tpu_custom_call.1} parent=35 // pred_fallthru
        _
      %p2707 = scmp.eq.s32.totalorder %s29, 2
      // Predicated region
      $region45: #{tpu_custom_call.1} parent=35 // pred_check
        %p2708 = pneg %p2707
      $region46: #{tpu_custom_call.1} parent=35 // pred_check_branch
        %2710 = sbr.rel (%p2708) target = $region48
      $region47: #{tpu_custom_call.1} parent=35 // pred_region
        %v2711 = vld [vmem:[%s259] sm:$0xff]
        %v2712 = vld [vmem:[%s259 + $0x8] sm:$0xff]
        %v2713 = vld [vmem:[%s259 + $0x10] sm:$0xff]
        %v2714 = vld [vmem:[%s259 + $0x18] sm:$0xff]
        %v2715 = vld [vmem:[%s259 + $0x20] sm:$0xff]
        %v2716 = vld [vmem:[%s259 + $0x28] sm:$0xff]
        %v2717 = vld [vmem:[%s259 + $0x30] sm:$0xff]
        %v2718 = vld [vmem:[%s259 + $0x38] sm:$0xff]
        %v2719 = vld [vmem:[%s259 + $0x40] sm:$0xff]
        %v2720 = vld [vmem:[%s259 + $0x48] sm:$0xff]
        %v2721 = vld [vmem:[%s259 + $0x50] sm:$0xff]
        %v2722 = vld [vmem:[%s259 + $0x58] sm:$0xff]
        %v2723 = vld [vmem:[%s259 + $0x60] sm:$0xff]
        %v2724 = vld [vmem:[%s259 + $0x68] sm:$0xff]
        %v2725 = vld [vmem:[%s259 + $0x70] sm:$0xff]
        %v2726 = vld [vmem:[%s259 + $0x78] sm:$0xff]
        %vm2727 = vcmp.gt.f32.partialorder %v2711, 0.0
        %vm2728 = vcmp.gt.f32.partialorder %v2712, 0.0
        %vm2729 = vcmp.gt.f32.partialorder %v2713, 0.0
        %vm2730 = vcmp.gt.f32.partialorder %v2714, 0.0
        %vm2731 = vcmp.gt.f32.partialorder %v2715, 0.0
        %vm2732 = vcmp.gt.f32.partialorder %v2716, 0.0
        %vm2733 = vcmp.gt.f32.partialorder %v2717, 0.0
        %vm2734 = vcmp.gt.f32.partialorder %v2718, 0.0
        %vm2735 = vcmp.gt.f32.partialorder %v2719, 0.0
        %vm2736 = vcmp.gt.f32.partialorder %v2720, 0.0
        %vm2737 = vcmp.gt.f32.partialorder %v2721, 0.0
        %vm2738 = vcmp.gt.f32.partialorder %v2722, 0.0
        %vm2739 = vcmp.gt.f32.partialorder %v2723, 0.0
        %vm2740 = vcmp.gt.f32.partialorder %v2724, 0.0
        %vm2741 = vcmp.gt.f32.partialorder %v2725, 0.0
        %vm2742 = vcmp.gt.f32.partialorder %v2726, 0.0
        %v2743 = vmul.f32 %v2711, 1.442695
        %v2744 = vpow.pop %v2743
        %v2745 = vmul.f32 %v2712, 1.442695
        %v2746 = vpow.pop %v2745
        %v2747 = vmul.f32 %v2713, 1.442695
        %v2748 = vpow.pop %v2747
        %v2749 = vmul.f32 %v2714, 1.442695
        %v2750 = vpow.pop %v2749
        %v2751 = vmul.f32 %v2715, 1.442695
        %v2752 = vpow.pop %v2751
        %v2753 = vmul.f32 %v2716, 1.442695
        %v2754 = vpow.pop %v2753
        %v2755 = vmul.f32 %v2717, 1.442695
        %v2756 = vpow.pop %v2755
        %v2757 = vmul.f32 %v2718, 1.442695
        %v2758 = vpow.pop %v2757
        %v2759 = vmul.f32 %v2719, 1.442695
        %v2760 = vpow.pop %v2759
        %v2761 = vmul.f32 %v2720, 1.442695
        %v2762 = vpow.pop %v2761
        %v2763 = vmul.f32 %v2721, 1.442695
        %v2764 = vpow.pop %v2763
        %v2765 = vmul.f32 %v2722, 1.442695
        %v2766 = vpow.pop %v2765
        %v2767 = vmul.f32 %v2723, 1.442695
        %v2768 = vpow.pop %v2767
        %v2769 = vmul.f32 %v2724, 1.442695
        %v2770 = vpow.pop %v2769
        %v2771 = vmul.f32 %v2725, 1.442695
        %v2772 = vpow.pop %v2771
        %v2773 = vmul.f32 %v2726, 1.442695
        %v2774 = vpow.pop %v2773
        %v2775 = vsub.f32 %v2744, 1.0
        %v2776 = vsub.f32 %v2746, 1.0
        %v2777 = vsub.f32 %v2748, 1.0
        %v2778 = vsub.f32 %v2750, 1.0
        %v2779 = vsub.f32 %v2752, 1.0
        %v2780 = vsub.f32 %v2754, 1.0
        %v2781 = vsub.f32 %v2756, 1.0
        %v2782 = vsub.f32 %v2758, 1.0
        %v2783 = vsub.f32 %v2760, 1.0
        %v2784 = vsub.f32 %v2762, 1.0
        %v2785 = vsub.f32 %v2764, 1.0
        %v2786 = vsub.f32 %v2766, 1.0
        %v2787 = vsub.f32 %v2768, 1.0
        %v2788 = vsub.f32 %v2770, 1.0
        %v2789 = vsub.f32 %v2772, 1.0
        %v2790 = vsub.f32 %v2774, 1.0
        %v2791 = vsel %vm2727, %v2711, %v2775
        %v2792 = vsel %vm2728, %v2712, %v2776
        %v2793 = vsel %vm2729, %v2713, %v2777
        %v2794 = vsel %vm2730, %v2714, %v2778
        %v2795 = vsel %vm2731, %v2715, %v2779
        %v2796 = vsel %vm2732, %v2716, %v2780
        %v2797 = vsel %vm2733, %v2717, %v2781
        %v2798 = vsel %vm2734, %v2718, %v2782
        %v2799 = vsel %vm2735, %v2719, %v2783
        %v2800 = vsel %vm2736, %v2720, %v2784
        %v2801 = vsel %vm2737, %v2721, %v2785
        %v2802 = vsel %vm2738, %v2722, %v2786
        %v2803 = vsel %vm2739, %v2723, %v2787
        %v2804 = vsel %vm2740, %v2724, %v2788
        %v2805 = vsel %vm2741, %v2725, %v2789
        %v2806 = vsel %vm2742, %v2726, %v2790
        %vm2807 = vcmask 261120
        %2808 = vst.msk [vmem:[%s259] sm:$0xff] %vm2807, %v2791
        %2809 = vst.msk [vmem:[%s259 + $0x8] sm:$0xff] %vm2807, %v2792
        %2810 = vst.msk [vmem:[%s259 + $0x10] sm:$0xff] %vm2807, %v2793
        %2811 = vst.msk [vmem:[%s259 + $0x18] sm:$0xff] %vm2807, %v2794
        %2812 = vst.msk [vmem:[%s259 + $0x20] sm:$0xff] %vm2807, %v2795
        %2813 = vst.msk [vmem:[%s259 + $0x28] sm:$0xff] %vm2807, %v2796
        %2814 = vst.msk [vmem:[%s259 + $0x30] sm:$0xff] %vm2807, %v2797
        %2815 = vst.msk [vmem:[%s259 + $0x38] sm:$0xff] %vm2807, %v2798
        %2816 = vst.msk [vmem:[%s259 + $0x40] sm:$0xff] %vm2807, %v2799
        %2817 = vst.msk [vmem:[%s259 + $0x48] sm:$0xff] %vm2807, %v2800
        %2818 = vst.msk [vmem:[%s259 + $0x50] sm:$0xff] %vm2807, %v2801
        %2819 = vst.msk [vmem:[%s259 + $0x58] sm:$0xff] %vm2807, %v2802
        %2820 = vst.msk [vmem:[%s259 + $0x60] sm:$0xff] %vm2807, %v2803
        %2821 = vst.msk [vmem:[%s259 + $0x68] sm:$0xff] %vm2807, %v2804
        %2822 = vst.msk [vmem:[%s259 + $0x70] sm:$0xff] %vm2807, %v2805
        %2823 = vst.msk [vmem:[%s259 + $0x78] sm:$0xff] %vm2807, %v2806
      $region48: #{tpu_custom_call.1} parent=35 // pred_fallthru
        _
      %s2824 = smul.u32 16, %s28
      %p2825 = scmp.lt.s32.totalorder %s2824, 31
      %s2826 = scalar_select %p2825, %s2824, 31
      %s2827 = smul.addr %s2826, 8
      %s2828 = scalar_lea.vmem %s5, %s2827
      // Predicated region
      $region49: #{tpu_custom_call.1} parent=35 // pred_check
        %p2829 = pneg %p150
      $region50: #{tpu_custom_call.1} parent=35 // pred_check_branch
        %2831 = sbr.rel (%p2829) target = $region52
      $region51: #{tpu_custom_call.1} parent=35 // pred_region
        %s2832 = smul.u32 16, %s28
      $region52: #{tpu_custom_call.1} parent=35 // pred_fallthru
        _
    $region36: #{tpu_custom_call.1} parent=5 // pred_fallthru
      _
    %p2833 = scmp.le.s32.totalorder 2, %s19
    // Predicated region
    $region53: #{tpu_custom_call.1} parent=5 // pred_check
      %p2834 = pneg %p2833
    $region54: #{tpu_custom_call.1} parent=5 // pred_check_branch
      %2836 = sbr.rel (%p2834) target = $region56
    $region55: #{tpu_custom_call.1} parent=5 // pred_region
      %s2837 = ssub.s32 %s19, 2
      // Predicated region
      $region57: #{tpu_custom_call.1} parent=55 // pred_check
        %p2838 = pneg %p156
      $region58: #{tpu_custom_call.1} parent=55 // pred_check_branch
        %2840 = sbr.rel (%p2838) target = $region60
      $region59: #{tpu_custom_call.1} parent=55 // pred_region
        %s2841 = smul.u32 16, %s30
        %p2842 = scmp.lt.s32.totalorder %s2841, 31
        %s2843 = scalar_select %p2842, %s2841, 31
        %s2844 = smul.addr %s2843, 8
        %s2845 = scalar_lea.vmem %s5, %s2844
      $region60: #{tpu_custom_call.1} parent=55 // pred_fallthru
        _
    $region56: #{tpu_custom_call.1} parent=5 // pred_fallthru
      _
  $region6: #{tpu_custom_call.1} parent=0 // loop_footer
    %s23 = sadd.s32 1, %s19
  $region7: #{tpu_custom_call.1} parent=0 // loop_footer_branch
    %18 = sbr.rel target = $region3
  $region8: #{tpu_custom_call.1} parent=0 // loop_exit
    _

</llo_original>
